<compile_context>
chip_gen: v5e
topology: v5e:2x2
jax: 0.10.0
libtpu: 0.0.40
codegen_flags: <defaults>
</compile_context>

<pallas_src>
import jax
import jax.numpy as jnp
from jax.experimental import pallas as pl
from jax.experimental.pallas import tpu as pltpu

LANE = 128
NEG_SLOPE = 0.01          # nn.LeakyReLU() default negative_slope
FUSE_MAX_N_PAD = 1024     # whole-graph-in-VMEM fused path threshold


# ---------------------------------------------------------------------------
# Fused kernel: both GCNConv layers + Linear + LeakyReLU in one pallas_call.
# Everything (A, X, weights) is VMEM-resident; grid iterates layer-2 row
# blocks ("arbitrary": step 0 fills the hw2 scratch used by later steps).
# ---------------------------------------------------------------------------
def _gcn_fused_kernel(a_ref, x_ref, w1_ref, b1_ref, w2_ref, b2_ref,
                      wl_ref, bl_ref, o_ref, hw2_ref):
    i = pl.program_id(0)
    tm = o_ref.shape[0]

    @pl.when(i == 0)
    def _():
        # Layer 1 for the whole graph (transform-then-propagate):
        #   h1 = A @ (X @ W1) + b1 ; cache hw2 = h1 @ W2 for all row blocks.
        xw1 = jnp.dot(x_ref[...], w1_ref[...],
                      preferred_element_type=jnp.float32)
        h1 = jnp.dot(a_ref[...], xw1.astype(jnp.bfloat16),
                     preferred_element_type=jnp.float32) + b1_ref[...]
        hw2_ref[...] = jnp.dot(h1.astype(jnp.bfloat16), w2_ref[...],
                               preferred_element_type=jnp.float32
                               ).astype(hw2_ref.dtype)

    # Layer 2 for this row block + fused Linear(h,1) + LeakyReLU.
    row0 = pl.multiple_of(i * tm, tm)
    h2 = jnp.dot(a_ref[pl.ds(row0, tm), :], hw2_ref[...],
                 preferred_element_type=jnp.float32) + b2_ref[...]
    z = jnp.dot(h2.astype(jnp.bfloat16), wl_ref[...],
                preferred_element_type=jnp.float32) + bl_ref[...]
    o_ref[...] = jnp.where(z > 0, z, NEG_SLOPE * z).astype(o_ref.dtype)


def _gcn_fused_call(a_pad, x_pad, w1, b1, w2, b2, wl, bl, *, tm):
    n_pad = a_pad.shape[0]
    f_in = x_pad.shape[1]
    f_h = w1.shape[1]
    f_final = wl.shape[1]
    grid = (n_pad // tm,)

    flops = 2 * n_pad * (2 * n_pad * f_h + f_in * f_h + f_h * f_h
                         + f_h * f_final)
    bytes_accessed = (n_pad * n_pad * a_pad.dtype.itemsize
                      + n_pad * f_in * x_pad.dtype.itemsize
                      + n_pad * f_final * 4)

    return pl.pallas_call(
        _gcn_fused_kernel,
        out_shape=jax.ShapeDtypeStruct((n_pad, f_final), jnp.float32),
        grid_spec=pltpu.PrefetchScalarGridSpec(
            num_scalar_prefetch=0,
            grid=grid,
            in_specs=[
                pl.BlockSpec((n_pad, n_pad), lambda i: (0, 0)),   # A (resident)
                pl.BlockSpec((n_pad, f_in), lambda i: (0, 0)),    # X (resident)
                pl.BlockSpec((f_in, f_h), lambda i: (0, 0)),      # W1
                pl.BlockSpec((1, f_h), lambda i: (0, 0)),         # b1
                pl.BlockSpec((f_h, f_h), lambda i: (0, 0)),       # W2
                pl.BlockSpec((1, f_h), lambda i: (0, 0)),         # b2
                pl.BlockSpec((f_h, f_final), lambda i: (0, 0)),   # Wl (padded)
                pl.BlockSpec((1, f_final), lambda i: (0, 0)),     # bl (padded)
            ],
            out_specs=pl.BlockSpec((tm, f_final), lambda i: (i, 0)),
            scratch_shapes=[pltpu.VMEM((n_pad, f_h), jnp.bfloat16)]),
        compiler_params=pltpu.CompilerParams(
            dimension_semantics=("arbitrary",)),
        cost_estimate=pl.CostEstimate(flops=int(flops), transcendentals=0,
                                      bytes_accessed=int(bytes_accessed)),
    )(a_pad, x_pad, w1, b1, w2, b2, wl, bl)


# ---------------------------------------------------------------------------
# Tiled path (large graphs): transform-then-propagate.
# ---------------------------------------------------------------------------
def _transform_kernel(h_ref, w_ref, o_ref):
    """HW = H @ W, one row block per grid step."""
    o_ref[...] = jnp.dot(h_ref[...], w_ref[...],
                         preferred_element_type=jnp.float32).astype(o_ref.dtype)


def _transform_call(h, w, *, tm):
    n_pad, f_in = h.shape
    f_out = w.shape[1]
    return pl.pallas_call(
        _transform_kernel,
        out_shape=jax.ShapeDtypeStruct((n_pad, f_out), jnp.bfloat16),
        grid_spec=pltpu.PrefetchScalarGridSpec(
            num_scalar_prefetch=0,
            grid=(n_pad // tm,),
            in_specs=[pl.BlockSpec((tm, f_in), lambda i: (i, 0)),
                      pl.BlockSpec((f_in, f_out), lambda i: (0, 0))],
            out_specs=pl.BlockSpec((tm, f_out), lambda i: (i, 0))),
        compiler_params=pltpu.CompilerParams(
            dimension_semantics=("parallel",)),
    )(h, w)


def _aggregate_kernel(a_ref, hw_ref, b_ref, o_ref, acc_ref):
    """acc += A[i,k] @ HW[k] with HW VMEM-resident; epilogue adds bias."""
    k = pl.program_id(1)
    tk = a_ref.shape[1]

    @pl.when(k == 0)
    def _():
        acc_ref[...] = jnp.zeros_like(acc_ref)

    start = pl.multiple_of(k * tk, tk)
    acc_ref[...] += jnp.dot(a_ref[...], hw_ref[pl.ds(start, tk), :],
                            preferred_element_type=jnp.float32)

    @pl.when(k == pl.num_programs(1) - 1)
    def _():
        o_ref[...] = (acc_ref[...] + b_ref[...]).astype(o_ref.dtype)


def _aggregate_linear_kernel(a_ref, hw_ref, b_ref, wl_ref, bl_ref,
                             o_ref, acc_ref):
    """Same as _aggregate_kernel with Linear(h,1)+LeakyReLU fused epilogue."""
    k = pl.program_id(1)
    tk = a_ref.shape[1]

    @pl.when(k == 0)
    def _():
        acc_ref[...] = jnp.zeros_like(acc_ref)

    start = pl.multiple_of(k * tk, tk)
    acc_ref[...] += jnp.dot(a_ref[...], hw_ref[pl.ds(start, tk), :],
                            preferred_element_type=jnp.float32)

    @pl.when(k == pl.num_programs(1) - 1)
    def _():
        h2 = acc_ref[...] + b_ref[...]
        z = jnp.dot(h2.astype(jnp.bfloat16), wl_ref[...],
                    preferred_element_type=jnp.float32) + bl_ref[...]
        o_ref[...] = jnp.where(z > 0, z, NEG_SLOPE * z).astype(o_ref.dtype)


def _aggregate_call(a_pad, hw, b, *, tm, tk, wl=None, bl=None,
                    out_dtype=jnp.bfloat16):
    n_pad = a_pad.shape[0]
    f_out = hw.shape[1]
    fuse = wl is not None
    f_final = wl.shape[1] if fuse else f_out
    grid = (n_pad // tm, n_pad // tk)

    in_specs = [
        pl.BlockSpec((tm, tk), lambda i, k: (i, k)),         # A tile (streamed)
        pl.BlockSpec((n_pad, f_out), lambda i, k: (0, 0)),   # HW (resident)
        pl.BlockSpec((1, f_out), lambda i, k: (0, 0)),       # bias (resident)
    ]
    args = [a_pad, hw, b]
    kernel = _aggregate_kernel
    if fuse:
        in_specs += [pl.BlockSpec((f_out, f_final), lambda i, k: (0, 0)),
                     pl.BlockSpec((1, f_final), lambda i, k: (0, 0))]
        args += [wl, bl]
        kernel = _aggregate_linear_kernel

    flops = 2 * n_pad * n_pad * f_out + (2 * n_pad * f_out * f_final if fuse else 0)
    bytes_accessed = (n_pad * n_pad * a_pad.dtype.itemsize       # A read once
                      + n_pad * f_out * hw.dtype.itemsize        # HW read once
                      + n_pad * f_final * jnp.dtype(out_dtype).itemsize)

    return pl.pallas_call(
        kernel,
        out_shape=jax.ShapeDtypeStruct((n_pad, f_final), out_dtype),
        grid_spec=pltpu.PrefetchScalarGridSpec(
            num_scalar_prefetch=0,
            grid=grid,
            in_specs=in_specs,
            out_specs=pl.BlockSpec((tm, f_final), lambda i, k: (i, 0)),
            scratch_shapes=[pltpu.VMEM((tm, f_out), jnp.float32)]),
        compiler_params=pltpu.CompilerParams(
            dimension_semantics=("parallel", "arbitrary")),
        cost_estimate=pl.CostEstimate(flops=int(flops), transcendentals=0,
                                      bytes_accessed=int(bytes_accessed)),
    )(*args)


# ---------------------------------------------------------------------------
# Forward pass
# ---------------------------------------------------------------------------
def _round_up(x, m):
    return -(-x // m) * m


def _pad2d(a, rows, cols, dtype=None):
    out = jnp.pad(a, ((0, rows - a.shape[0]), (0, cols - a.shape[1])))
    return out.astype(dtype) if dtype is not None else out


def gcn_forward(x, a_norm, params, *, force_tiled=False, tile=None):
    """x: (N, in_dim) f32 node features; a_norm: (N, N) f32 normalized adj."""
    w1, b1, w2, b2, wl, bl = params
    n, in_dim = x.shape
    h_dim = w1.shape[1]

    f_in_pad = _round_up(in_dim, LANE)
    f_h_pad = _round_up(h_dim, LANE)

    use_fused = (not force_tiled) and _round_up(n, 256) <= FUSE_MAX_N_PAD
    if use_fused:
        tm = 256
        tk = tm
        n_pad = _round_up(n, tm)
    else:
        # 512x512 tiles: 256-aligned (v6e/v7x MXU) and big enough to reach the
        # HBM roofline; keeps >=2 parallel row blocks whenever n_pad > 1024.
        tm = tk = tile if tile is not None else 512
        n_pad = _round_up(n, tm)

    # Zero-padding keeps valid rows exact: padded A columns are zero, so the
    # non-zero bias values sitting in padded h1 rows never contribute, and
    # padded feature columns stay zero through every layer.
    a_pad = _pad2d(a_norm, n_pad, n_pad, jnp.bfloat16)
    x_pad = _pad2d(x, n_pad, f_in_pad, jnp.bfloat16)
    w1_pad = _pad2d(w1, f_in_pad, f_h_pad, jnp.bfloat16)
    b1_pad = _pad2d(b1, 1, f_h_pad, jnp.float32)
    w2_pad = _pad2d(w2, f_h_pad, f_h_pad, jnp.bfloat16)
    b2_pad = _pad2d(b2, 1, f_h_pad, jnp.float32)
    wl_pad = _pad2d(wl, f_h_pad, LANE, jnp.bfloat16)  # real weights in column 0
    bl_pad = _pad2d(bl, 1, LANE, jnp.float32)

    if use_fused:
        z = _gcn_fused_call(a_pad, x_pad, w1_pad, b1_pad, w2_pad, b2_pad,
                            wl_pad, bl_pad, tm=tm)
    else:
        hw1 = _transform_call(x_pad, w1_pad, tm=tm)                 # X @ W1
        h1 = _aggregate_call(a_pad, hw1, b1_pad, tm=tm, tk=tk,
                             out_dtype=jnp.bfloat16)                # A @ . + b1
        hw2 = _transform_call(h1, w2_pad, tm=tm)                    # h1 @ W2
        z = _aggregate_call(a_pad, hw2, b2_pad, tm=tm, tk=tk,
                            wl=wl_pad, bl=bl_pad,
                            out_dtype=jnp.float32)     # A @ . + b2, Linear, LReLU
    return z[:n, :1]


# ---------------------------------------------------------------------------
# Graph / parameter construction + pure-JAX reference
# ---------------------------------------------------------------------------
def build_gcn_norm_adjacency(edge_index, num_nodes):
    """Dense PyG gcn_norm: A_hat = A + I, D^-1/2 A_hat D^-1/2 (A[dst, src])."""
    src, dst = edge_index[0], edge_index[1]
    a = jnp.zeros((num_nodes, num_nodes), jnp.float32)
    a = a.at[dst, src].add(1.0)
    a = a + jnp.eye(num_nodes, dtype=jnp.float32)
    deg = a.sum(axis=1)
    dinv = jnp.where(deg > 0, jax.lax.rsqrt(deg), 0.0)
    return dinv[:, None] * a * dinv[None, :]


def init_params(key, in_dim, h_dim):
    k1, k2, k3, k4 = jax.random.split(key, 4)
    w1 = jax.random.normal(k1, (in_dim, h_dim), jnp.float32) * (1.0 / jnp.sqrt(in_dim))
    b1 = jnp.zeros((1, h_dim), jnp.float32)
    w2 = jax.random.normal(k2, (h_dim, h_dim), jnp.float32) * (1.0 / jnp.sqrt(h_dim))
    b2 = jnp.zeros((1, h_dim), jnp.float32)
    lim = 1.0 / jnp.sqrt(h_dim)
    wl = jax.random.uniform(k3, (h_dim, 1), jnp.float32, -lim, lim)
    bl = jax.random.uniform(k4, (1, 1), jnp.float32, -lim, lim)
    return (w1, b1, w2, b2, wl, bl)


def gcn_reference(x, a_norm, params):
    # NOTE: the reference torch module has NO nonlinearity between the two
    # GCNConv layers (only dropout, identity in eval mode) — matched here.
    w1, b1, w2, b2, wl, bl = params
    h1 = a_norm @ (x @ w1) + b1
    h2 = a_norm @ (h1 @ w2) + b2
    z = h2 @ wl + bl
    return jnp.where(z > 0, z, NEG_SLOPE * z)


if __name__ == "__main__":
    key = jax.random.PRNGKey(0)
    N, in_dim, h_dim, num_relations = 200, 8, 8, 3
    E = 600

    kx, ke, kt, ktime, kp = jax.random.split(key, 5)
    x = jax.random.normal(kx, (N, in_dim), jnp.float32)
    edge_index = jax.random.randint(ke, (2, E), 0, N, dtype=jnp.int32)
    edge_type = jax.random.randint(kt, (E,), 0, num_relations, dtype=jnp.int32)  # unused in forward
    edge_time = jax.random.normal(ktime, (E,), jnp.float32)                      # unused in forward

    a_norm = build_gcn_norm_adjacency(edge_index, N)
    params = init_params(kp, in_dim, h_dim)
    ref = gcn_reference(x, a_norm, params)

    # Fused single-call path (small graph: A, X, weights and h1@W2 in VMEM).
    out = gcn_forward(x, a_norm, params)
    jax.block_until_ready(out)
    assert out.shape == (N, 1) and out.dtype == jnp.float32
    err_fused = float(jnp.max(jnp.abs(out - ref)))
    assert err_fused < 0.1, f"fused path max abs error too large: {err_fused}"

    # Tiled streaming path (large-graph code path), exercised at small tiles.
    out_t = gcn_forward(x, a_norm, params, force_tiled=True, tile=256)
    jax.block_until_ready(out_t)
    assert out_t.shape == (N, 1) and out_t.dtype == jnp.float32
    err_tiled = float(jnp.max(jnp.abs(out_t - ref)))
    assert err_tiled < 0.1, f"tiled path max abs error too large: {err_tiled}"

    print("KERNEL_OK")
</pallas_src>

<mosaic_0001>
module attributes {stable_mosaic.version = 11 : i64} {
  func.func @_gcn_fused_kernel(%arg0: i32, %arg1: memref<256x256xbf16, #tpu.memory_space<vmem>>, %arg2: memref<256x128xbf16, #tpu.memory_space<vmem>>, %arg3: memref<128x128xbf16, #tpu.memory_space<vmem>>, %arg4: memref<1x128xf32, #tpu.memory_space<vmem>>, %arg5: memref<128x128xbf16, #tpu.memory_space<vmem>>, %arg6: memref<1x128xf32, #tpu.memory_space<vmem>>, %arg7: memref<128x128xbf16, #tpu.memory_space<vmem>>, %arg8: memref<1x128xf32, #tpu.memory_space<vmem>>, %arg9: memref<256x128xf32, #tpu.memory_space<vmem>>, %arg10: memref<256x128xbf16, #tpu.memory_space<vmem>>) attributes {dimension_semantics = [#tpu.dimension_semantics<arbitrary>], iteration_bounds = array<i64: 1>, scalar_prefetch = 0 : i64, scratch_operands = 1 : i64, tpu.core_type = #tpu.core_type<tc>, window_params = [{pipeline_mode = #tpu.pipeline_mode<synchronous>, transform_indices = @transform_0, window_bounds = array<i64: 256, 256>}, {pipeline_mode = #tpu.pipeline_mode<synchronous>, transform_indices = @transform_1, window_bounds = array<i64: 256, 128>}, {pipeline_mode = #tpu.pipeline_mode<synchronous>, transform_indices = @transform_2, window_bounds = array<i64: 128, 128>}, {pipeline_mode = #tpu.pipeline_mode<synchronous>, transform_indices = @transform_3, window_bounds = array<i64: 1, 128>}, {pipeline_mode = #tpu.pipeline_mode<synchronous>, transform_indices = @transform_4, window_bounds = array<i64: 128, 128>}, {pipeline_mode = #tpu.pipeline_mode<synchronous>, transform_indices = @transform_5, window_bounds = array<i64: 1, 128>}, {pipeline_mode = #tpu.pipeline_mode<synchronous>, transform_indices = @transform_6, window_bounds = array<i64: 128, 128>}, {pipeline_mode = #tpu.pipeline_mode<synchronous>, transform_indices = @transform_7, window_bounds = array<i64: 1, 128>}, {transform_indices = @transform_8, window_bounds = array<i64: 256, 128>}]} {
    %c0_i32 = arith.constant 0 : i32
    %0 = arith.cmpi eq, %arg0, %c0_i32 : i32
    %1 = arith.extui %0 : i1 to i32
    %c0_i32_0 = arith.constant 0 : i32
    %2 = arith.cmpi ne, %1, %c0_i32_0 : i32
    scf.if %2 {
      %c0_14 = arith.constant 0 : index
      %c0_15 = arith.constant 0 : index
      %24 = vector.load %arg2[%c0_14, %c0_15] : memref<256x128xbf16, #tpu.memory_space<vmem>>, vector<256x128xbf16>
      %c0_16 = arith.constant 0 : index
      %c0_17 = arith.constant 0 : index
      %25 = vector.load %arg3[%c0_16, %c0_17] : memref<128x128xbf16, #tpu.memory_space<vmem>>, vector<128x128xbf16>
      %cst_18 = arith.constant dense<0.000000e+00> : vector<256x128xf32>
      %26 = tpu.matmul %24, %25, %cst_18 {dimension_numbers = #tpu.dot_dimension_numbers<[1], [0], [0], [1], [0, 0, 1, 1], [], []>} : vector<256x128xbf16>, vector<128x128xbf16>, vector<256x128xf32> -> vector<256x128xf32>
      %c0_19 = arith.constant 0 : index
      %c0_20 = arith.constant 0 : index
      %27 = vector.load %arg1[%c0_19, %c0_20] : memref<256x256xbf16, #tpu.memory_space<vmem>>, vector<256x256xbf16>
      %28 = arith.truncf %26 : vector<256x128xf32> to vector<256x128xbf16>
      %cst_21 = arith.constant dense<0.000000e+00> : vector<256x128xf32>
      %29 = tpu.matmul %27, %28, %cst_21 {dimension_numbers = #tpu.dot_dimension_numbers<[1], [0], [0], [1], [0, 0, 1, 1], [], []>} : vector<256x256xbf16>, vector<256x128xbf16>, vector<256x128xf32> -> vector<256x128xf32>
      %c0_22 = arith.constant 0 : index
      %c0_23 = arith.constant 0 : index
      %30 = vector.load %arg4[%c0_22, %c0_23] : memref<1x128xf32, #tpu.memory_space<vmem>>, vector<1x128xf32>
      %31 = vector.broadcast %30 : vector<1x128xf32> to vector<256x128xf32>
      %32 = arith.addf %29, %31 : vector<256x128xf32>
      %33 = arith.truncf %32 : vector<256x128xf32> to vector<256x128xbf16>
      %c0_24 = arith.constant 0 : index
      %c0_25 = arith.constant 0 : index
      %34 = vector.load %arg5[%c0_24, %c0_25] : memref<128x128xbf16, #tpu.memory_space<vmem>>, vector<128x128xbf16>
      %cst_26 = arith.constant dense<0.000000e+00> : vector<256x128xf32>
      %35 = tpu.matmul %33, %34, %cst_26 {dimension_numbers = #tpu.dot_dimension_numbers<[1], [0], [0], [1], [0, 0, 1, 1], [], []>} : vector<256x128xbf16>, vector<128x128xbf16>, vector<256x128xf32> -> vector<256x128xf32>
      %36 = arith.truncf %35 : vector<256x128xf32> to vector<256x128xbf16>
      %c0_27 = arith.constant 0 : index
      %c0_28 = arith.constant 0 : index
      %37 = vector.load %arg10[%c0_27, %c0_28] : memref<256x128xbf16, #tpu.memory_space<vmem>>, vector<256x128xbf16>
      tpu.vector_store %arg10[%c0_27, %c0_28], %36 {strides = array<i32>} : memref<256x128xbf16, #tpu.memory_space<vmem>>, vector<256x128xbf16>,
    } else {
    }
    %c256_i32 = arith.constant 256 : i32
    %3 = arith.muli %arg0, %c256_i32 : i32
    %4 = tpu.assume_multiple %3, 256 : i32
    %5 = arith.index_cast %4 : i32 to index
    %c0 = arith.constant 0 : index
    %6 = vector.load %arg1[%5, %c0] : memref<256x256xbf16, #tpu.memory_space<vmem>>, vector<256x256xbf16>
    %c0_1 = arith.constant 0 : index
    %c0_2 = arith.constant 0 : index
    %7 = vector.load %arg10[%c0_1, %c0_2] : memref<256x128xbf16, #tpu.memory_space<vmem>>, vector<256x128xbf16>
    %cst = arith.constant dense<0.000000e+00> : vector<256x128xf32>
    %8 = tpu.matmul %6, %7, %cst {dimension_numbers = #tpu.dot_dimension_numbers<[1], [0], [0], [1], [0, 0, 1, 1], [], []>} : vector<256x256xbf16>, vector<256x128xbf16>, vector<256x128xf32> -> vector<256x128xf32>
    %c0_3 = arith.constant 0 : index
    %c0_4 = arith.constant 0 : index
    %9 = vector.load %arg6[%c0_3, %c0_4] : memref<1x128xf32, #tpu.memory_space<vmem>>, vector<1x128xf32>
    %10 = vector.broadcast %9 : vector<1x128xf32> to vector<256x128xf32>
    %11 = arith.addf %8, %10 : vector<256x128xf32>
    %12 = arith.truncf %11 : vector<256x128xf32> to vector<256x128xbf16>
    %c0_5 = arith.constant 0 : index
    %c0_6 = arith.constant 0 : index
    %13 = vector.load %arg7[%c0_5, %c0_6] : memref<128x128xbf16, #tpu.memory_space<vmem>>, vector<128x128xbf16>
    %cst_7 = arith.constant dense<0.000000e+00> : vector<256x128xf32>
    %14 = tpu.matmul %12, %13, %cst_7 {dimension_numbers = #tpu.dot_dimension_numbers<[1], [0], [0], [1], [0, 0, 1, 1], [], []>} : vector<256x128xbf16>, vector<128x128xbf16>, vector<256x128xf32> -> vector<256x128xf32>
    %c0_8 = arith.constant 0 : index
    %c0_9 = arith.constant 0 : index
    %15 = vector.load %arg8[%c0_8, %c0_9] : memref<1x128xf32, #tpu.memory_space<vmem>>, vector<1x128xf32>
    %16 = vector.broadcast %15 : vector<1x128xf32> to vector<256x128xf32>
    %17 = arith.addf %14, %16 : vector<256x128xf32>
    %cst_10 = arith.constant 0.000000e+00 : f32
    %18 = vector.broadcast %cst_10 : f32 to vector<256x128xf32>
    %19 = arith.cmpf ogt, %17, %18 : vector<256x128xf32>
    %cst_11 = arith.constant 0.00999999977 : f32
    %20 = vector.broadcast %cst_11 : f32 to vector<256x128xf32>
    %21 = arith.mulf %20, %17 : vector<256x128xf32>
    %22 = arith.select %19, %17, %21 : vector<256x128xi1>, vector<256x128xf32>
    %c0_12 = arith.constant 0 : index
    %c0_13 = arith.constant 0 : index
    %23 = vector.load %arg9[%c0_12, %c0_13] : memref<256x128xf32, #tpu.memory_space<vmem>>, vector<256x128xf32>
    tpu.vector_store %arg9[%c0_12, %c0_13], %22 {strides = array<i32>} : memref<256x128xf32, #tpu.memory_space<vmem>>, vector<256x128xf32>,
    return
  }
  func.func @transform_0(%arg0: i32) -> (i32, i32) {
    %c0_i32 = arith.constant 0 : i32
    %c0_i32_0 = arith.constant 0 : i32
    %c0_i32_1 = arith.constant 0 : i32
    return %c0_i32, %c0_i32_0 : i32, i32
  }
  func.func @transform_1(%arg0: i32) -> (i32, i32) {
    %c0_i32 = arith.constant 0 : i32
    %c0_i32_0 = arith.constant 0 : i32
    %c0_i32_1 = arith.constant 0 : i32
    return %c0_i32, %c0_i32_0 : i32, i32
  }
  func.func @transform_2(%arg0: i32) -> (i32, i32) {
    %c0_i32 = arith.constant 0 : i32
    %c0_i32_0 = arith.constant 0 : i32
    %c0_i32_1 = arith.constant 0 : i32
    return %c0_i32, %c0_i32_0 : i32, i32
  }
  func.func @transform_3(%arg0: i32) -> (i32, i32) {
    %c0_i32 = arith.constant 0 : i32
    %c0_i32_0 = arith.constant 0 : i32
    %c0_i32_1 = arith.constant 0 : i32
    return %c0_i32, %c0_i32_0 : i32, i32
  }
  func.func @transform_4(%arg0: i32) -> (i32, i32) {
    %c0_i32 = arith.constant 0 : i32
    %c0_i32_0 = arith.constant 0 : i32
    %c0_i32_1 = arith.constant 0 : i32
    return %c0_i32, %c0_i32_0 : i32, i32
  }
  func.func @transform_5(%arg0: i32) -> (i32, i32) {
    %c0_i32 = arith.constant 0 : i32
    %c0_i32_0 = arith.constant 0 : i32
    %c0_i32_1 = arith.constant 0 : i32
    return %c0_i32, %c0_i32_0 : i32, i32
  }
  func.func @transform_6(%arg0: i32) -> (i32, i32) {
    %c0_i32 = arith.constant 0 : i32
    %c0_i32_0 = arith.constant 0 : i32
    %c0_i32_1 = arith.constant 0 : i32
    return %c0_i32, %c0_i32_0 : i32, i32
  }
  func.func @transform_7(%arg0: i32) -> (i32, i32) {
    %c0_i32 = arith.constant 0 : i32
    %c0_i32_0 = arith.constant 0 : i32
    %c0_i32_1 = arith.constant 0 : i32
    return %c0_i32, %c0_i32_0 : i32, i32
  }
  func.func @transform_8(%arg0: i32) -> (i32, i32) {
    %c0_i32 = arith.constant 0 : i32
    %c0_i32_0 = arith.constant 0 : i32
    return %arg0, %c0_i32 : i32, i32
  }
}

</mosaic_0001>

<llo_original>
// kernel: tpu_custom_call.1
$region0: #{tpu_custom_call.1}
  #allocation0 [shape = 'u32[]', space=smem, size = 0x4, offset = 0x4, fixed_abs, tag = 'smem constant byte address 0x4 - core index']
  #allocation1 [shape = 'u32[72,128]{1,0:T(1,128)}', space=vmem, size = 0x9000, scoped, tag = 'internal scratch']
  #allocation2 [shape = 'bf16[256,128]{1,0:T(8,128)(2,1)}', space=vmem, size = 0x10000, scoped, tag = 'scratch operand']
  %s0 = inlined_call_operand.hbm [shape: bf16[256,256], index: 0, kind: input, shape index: {}]
  %s1 = inlined_call_operand.hbm [shape: bf16[256,128], index: 1, kind: input, shape index: {}]
  %s2 = inlined_call_operand.hbm [shape: bf16[128,128], index: 2, kind: input, shape index: {}]
  %s3 = inlined_call_operand.vmem [shape: f32[1,128], index: 3, kind: input, shape index: {}]
  %s4 = inlined_call_operand.hbm [shape: bf16[128,128], index: 4, kind: input, shape index: {}]
  %s5 = inlined_call_operand.vmem [shape: f32[1,128], index: 5, kind: input, shape index: {}]
  %s6 = inlined_call_operand.hbm [shape: bf16[128,128], index: 6, kind: input, shape index: {}]
  %s7 = inlined_call_operand.vmem [shape: f32[1,128], index: 7, kind: input, shape index: {}]
  %s8 = inlined_call_operand.hbm [shape: f32[256,128], index: 8, kind: output, shape index: {}]
  %s9 = sld [smem:[#allocation0]]
  $region66: #{tpu_custom_call.1} parent=0
    _
  %s11 = ssub.s32 1, %s9
  %s12 = scalar_select 0, %s11, %s9
  $region1: #{tpu_custom_call.1} parent=0
    #allocation3 [shape = 'u8[131072]{0}', space=vmem, size = 0x20000, scoped, tag = 'input window, operand 0, single buffered']
    #allocation4 [shape = 's32[1]{0}', space=sflag, size = 0x4, scoped, tag = 'scoped memory for tpu_custom_call.1']
    #allocation5 [shape = 's32[1]{0}', space=sflag, size = 0x4, scoped, tag = 'scoped memory for tpu_custom_call.1']
    #allocation6 [shape = 'u8[65536]{0}', space=vmem, size = 0x10000, scoped, tag = 'input window, operand 1, single buffered']
    #allocation7 [shape = 's32[1]{0}', space=sflag, size = 0x4, scoped, tag = 'scoped memory for tpu_custom_call.1']
    #allocation8 [shape = 'u8[32768]{0}', space=vmem, size = 0x8000, scoped, tag = 'input window, operand 2, single buffered']
    #allocation9 [shape = 'u8[32768]{0}', space=vmem, size = 0x8000, scoped, tag = 'input window, operand 4, single buffered']
    #allocation10 [shape = 's32[1]{0}', space=sflag, size = 0x4, scoped, tag = 'scoped memory for tpu_custom_call.1']
    #allocation11 [shape = 'u8[32768]{0}', space=vmem, size = 0x8000, scoped, tag = 'input window, operand 6, single buffered']
    #allocation12 [shape = 'u8[131072]{0}', space=vmem, size = 0x20000, scoped, tag = 'output window, operand 0, single buffered']
    %13 = vsyncpa [#allocation4], 0
    %14 = vsyncpa [#allocation7], 0
    %15 = vsyncpa [#allocation10], 0
    %16 = vsyncpa [#allocation5], 0
    // Predicated region
    $region2: #{tpu_custom_call.1} parent=1 // pred_check
      _
    $region3: #{tpu_custom_call.1} parent=1 // pred_check_branch
      %18 = sbr.rel (0) target = $region5
    $region4: #{tpu_custom_call.1} parent=1 // pred_region
      %20 = vsyncadd [#allocation4], 0
      %s21 = sshll.u32 %s0, 4
      %s22 = int_to_ptr.hbm [resolvable:$true] %s21
      %s23 = sshll.u32 [#allocation3], 4
      %s24 = int_to_ptr.vmem [resolvable:$true] %s23
      %29 = dma.hbm_to_vmem [thread:$0]  %s22, 4096, %s24, [#allocation4], 128, 128, 8
    $region5: #{tpu_custom_call.1} parent=1 // pred_fallthru
      _
    // Predicated region
    $region6: #{tpu_custom_call.1} parent=1 // pred_check
      _
    $region7: #{tpu_custom_call.1} parent=1 // pred_check_branch
      %31 = sbr.rel (0) target = $region9
    $region8: #{tpu_custom_call.1} parent=1 // pred_region
      %33 = vsyncadd [#allocation7], 0
      %s34 = sshll.u32 %s1, 4
      %s35 = int_to_ptr.hbm [resolvable:$true] %s34
      %s36 = sshll.u32 [#allocation6], 4
      %s37 = int_to_ptr.vmem [resolvable:$true] %s36
      %42 = dma.hbm_to_vmem [thread:$0]  %s35, 2048, %s37, [#allocation7], 64, 64, 4
    $region9: #{tpu_custom_call.1} parent=1 // pred_fallthru
      _
    // Predicated region
    $region10: #{tpu_custom_call.1} parent=1 // pred_check
      _
    $region11: #{tpu_custom_call.1} parent=1 // pred_check_branch
      %44 = sbr.rel (0) target = $region13
    $region12: #{tpu_custom_call.1} parent=1 // pred_region
      %46 = vsyncadd [#allocation7], 0
      %s47 = sshll.u32 %s2, 4
      %s48 = int_to_ptr.hbm [resolvable:$true] %s47
      %s49 = sshll.u32 [#allocation8], 4
      %s50 = int_to_ptr.vmem [resolvable:$true] %s49
      %55 = dma.hbm_to_vmem [thread:$0]  %s48, 1024, %s50, [#allocation7], 64, 64, 4
    $region13: #{tpu_custom_call.1} parent=1 // pred_fallthru
      _
    // Predicated region
    $region14: #{tpu_custom_call.1} parent=1 // pred_check
      _
    $region15: #{tpu_custom_call.1} parent=1 // pred_check_branch
      %57 = sbr.rel (0) target = $region17
    $region16: #{tpu_custom_call.1} parent=1 // pred_region
      _
    $region17: #{tpu_custom_call.1} parent=1 // pred_fallthru
      _
    // Predicated region
    $region18: #{tpu_custom_call.1} parent=1 // pred_check
      _
    $region19: #{tpu_custom_call.1} parent=1 // pred_check_branch
      %59 = sbr.rel (0) target = $region21
    $region20: #{tpu_custom_call.1} parent=1 // pred_region
      %61 = vsyncadd [#allocation10], 0
      %s62 = sshll.u32 %s4, 4
      %s63 = int_to_ptr.hbm [resolvable:$true] %s62
      %s64 = sshll.u32 [#allocation9], 4
      %s65 = int_to_ptr.vmem [resolvable:$true] %s64
      %70 = dma.hbm_to_vmem [thread:$0]  %s63, 1024, %s65, [#allocation10], 64, 64, 4
    $region21: #{tpu_custom_call.1} parent=1 // pred_fallthru
      _
    // Predicated region
    $region22: #{tpu_custom_call.1} parent=1 // pred_check
      _
    $region23: #{tpu_custom_call.1} parent=1 // pred_check_branch
      %72 = sbr.rel (0) target = $region25
    $region24: #{tpu_custom_call.1} parent=1 // pred_region
      _
    $region25: #{tpu_custom_call.1} parent=1 // pred_fallthru
      _
    // Predicated region
    $region26: #{tpu_custom_call.1} parent=1 // pred_check
      _
    $region27: #{tpu_custom_call.1} parent=1 // pred_check_branch
      %74 = sbr.rel (0) target = $region29
    $region28: #{tpu_custom_call.1} parent=1 // pred_region
      %76 = vsyncadd [#allocation10], 0
      %s77 = sshll.u32 %s6, 4
      %s78 = int_to_ptr.hbm [resolvable:$true] %s77
      %s79 = sshll.u32 [#allocation11], 4
      %s80 = int_to_ptr.vmem [resolvable:$true] %s79
      %85 = dma.hbm_to_vmem [thread:$0]  %s78, 1024, %s80, [#allocation10], 64, 64, 4
    $region29: #{tpu_custom_call.1} parent=1 // pred_fallthru
      _
    // Predicated region
    $region30: #{tpu_custom_call.1} parent=1 // pred_check
      _
    $region31: #{tpu_custom_call.1} parent=1 // pred_check_branch
      %87 = sbr.rel (0) target = $region33
    $region32: #{tpu_custom_call.1} parent=1 // pred_region
      _
    $region33: #{tpu_custom_call.1} parent=1 // pred_fallthru
      _
    // Predicated region
    $region34: #{tpu_custom_call.1} parent=1 // pred_check
      _
    $region35: #{tpu_custom_call.1} parent=1 // pred_check_branch
      %89 = sbr.rel (0) target = $region37
    $region36: #{tpu_custom_call.1} parent=1 // pred_region
      %91 = dma.done [#allocation4], 4096
    $region37: #{tpu_custom_call.1} parent=1 // pred_fallthru
      _
    // Predicated region
    $region38: #{tpu_custom_call.1} parent=1 // pred_check
      _
    $region39: #{tpu_custom_call.1} parent=1 // pred_check_branch
      %93 = sbr.rel (0) target = $region41
    $region40: #{tpu_custom_call.1} parent=1 // pred_region
      %95 = dma.done [#allocation7], 2048
    $region41: #{tpu_custom_call.1} parent=1 // pred_fallthru
      _
    // Predicated region
    $region42: #{tpu_custom_call.1} parent=1 // pred_check
      _
    $region43: #{tpu_custom_call.1} parent=1 // pred_check_branch
      %97 = sbr.rel (0) target = $region45
    $region44: #{tpu_custom_call.1} parent=1 // pred_region
      %99 = dma.done [#allocation7], 1024
    $region45: #{tpu_custom_call.1} parent=1 // pred_fallthru
      _
    // Predicated region
    $region46: #{tpu_custom_call.1} parent=1 // pred_check
      _
    $region47: #{tpu_custom_call.1} parent=1 // pred_check_branch
      %101 = sbr.rel (0) target = $region49
    $region48: #{tpu_custom_call.1} parent=1 // pred_region
      %103 = dma.done [#allocation10], 1024
    $region49: #{tpu_custom_call.1} parent=1 // pred_fallthru
      _
    // Predicated region
    $region50: #{tpu_custom_call.1} parent=1 // pred_check
      _
    $region51: #{tpu_custom_call.1} parent=1 // pred_check_branch
      %105 = sbr.rel (0) target = $region53
    $region52: #{tpu_custom_call.1} parent=1 // pred_region
      %107 = dma.done [#allocation10], 1024
    $region53: #{tpu_custom_call.1} parent=1 // pred_fallthru
      _
    %p108 = scmp.eq.s32.totalorder 0, 0
    // Predicated region
    $region54: #{tpu_custom_call.1} parent=1 // pred_check
      %p109 = pneg %p108
    $region55: #{tpu_custom_call.1} parent=1 // pred_check_branch
      %111 = sbr.rel (%p109) target = $region57
    $region56: #{tpu_custom_call.1} parent=1 // pred_region
      %v112 = vld [vmem:[#allocation6] sm:$0xf]
      %v113 = vld [vmem:[#allocation6 + $0x4] sm:$0xf]
      %v114 = vld [vmem:[#allocation6 + $0x8] sm:$0xf]
      %v115 = vld [vmem:[#allocation6 + $0xc] sm:$0xf]
      %v116 = vld [vmem:[#allocation6 + $0x10] sm:$0xf]
      %v117 = vld [vmem:[#allocation6 + $0x14] sm:$0xf]
      %v118 = vld [vmem:[#allocation6 + $0x18] sm:$0xf]
      %v119 = vld [vmem:[#allocation6 + $0x1c] sm:$0xf]
      %v120 = vld [vmem:[#allocation6 + $0x20] sm:$0xf]
      %v121 = vld [vmem:[#allocation6 + $0x24] sm:$0xf]
      %v122 = vld [vmem:[#allocation6 + $0x28] sm:$0xf]
      %v123 = vld [vmem:[#allocation6 + $0x2c] sm:$0xf]
      %v124 = vld [vmem:[#allocation6 + $0x30] sm:$0xf]
      %v125 = vld [vmem:[#allocation6 + $0x34] sm:$0xf]
      %v126 = vld [vmem:[#allocation6 + $0x38] sm:$0xf]
      %v127 = vld [vmem:[#allocation6 + $0x3c] sm:$0xf]
      %v128 = vld [vmem:[#allocation6 + $0x40] sm:$0xf]
      %v129 = vld [vmem:[#allocation6 + $0x44] sm:$0xf]
      %v130 = vld [vmem:[#allocation6 + $0x48] sm:$0xf]
      %v131 = vld [vmem:[#allocation6 + $0x4c] sm:$0xf]
      %v132 = vld [vmem:[#allocation6 + $0x50] sm:$0xf]
      %v133 = vld [vmem:[#allocation6 + $0x54] sm:$0xf]
      %v134 = vld [vmem:[#allocation6 + $0x58] sm:$0xf]
      %v135 = vld [vmem:[#allocation6 + $0x5c] sm:$0xf]
      %v136 = vld [vmem:[#allocation6 + $0x60] sm:$0xf]
      %v137 = vld [vmem:[#allocation6 + $0x64] sm:$0xf]
      %v138 = vld [vmem:[#allocation6 + $0x68] sm:$0xf]
      %v139 = vld [vmem:[#allocation6 + $0x6c] sm:$0xf]
      %v140 = vld [vmem:[#allocation6 + $0x70] sm:$0xf]
      %v141 = vld [vmem:[#allocation6 + $0x74] sm:$0xf]
      %v142 = vld [vmem:[#allocation6 + $0x78] sm:$0xf]
      %v143 = vld [vmem:[#allocation6 + $0x7c] sm:$0xf]
      %v144 = vld [vmem:[#allocation8] sm:$0xf]
      %v145 = vld [vmem:[#allocation8 + $0x4] sm:$0xf]
      %v146 = vld [vmem:[#allocation8 + $0x8] sm:$0xf]
      %v147 = vld [vmem:[#allocation8 + $0xc] sm:$0xf]
      %v148 = vld [vmem:[#allocation8 + $0x10] sm:$0xf]
      %v149 = vld [vmem:[#allocation8 + $0x14] sm:$0xf]
      %v150 = vld [vmem:[#allocation8 + $0x18] sm:$0xf]
      %v151 = vld [vmem:[#allocation8 + $0x1c] sm:$0xf]
      %v152 = vld [vmem:[#allocation8 + $0x20] sm:$0xf]
      %v153 = vld [vmem:[#allocation8 + $0x24] sm:$0xf]
      %v154 = vld [vmem:[#allocation8 + $0x28] sm:$0xf]
      %v155 = vld [vmem:[#allocation8 + $0x2c] sm:$0xf]
      %v156 = vld [vmem:[#allocation8 + $0x30] sm:$0xf]
      %v157 = vld [vmem:[#allocation8 + $0x34] sm:$0xf]
      %v158 = vld [vmem:[#allocation8 + $0x38] sm:$0xf]
      %v159 = vld [vmem:[#allocation8 + $0x3c] sm:$0xf]
      %v192 = vunpack.c.l.b16 %v112
      %v193 = vunpack.c.l.b16 %v113
      %v194 = vunpack.c.l.b16 %v114
      %v195 = vunpack.c.l.b16 %v115
      %v196 = vunpack.c.l.b16 %v116
      %v197 = vunpack.c.l.b16 %v117
      %v198 = vunpack.c.l.b16 %v118
      %v199 = vunpack.c.l.b16 %v119
      %v200 = vunpack.c.l.b16 %v120
      %v201 = vunpack.c.l.b16 %v121
      %v202 = vunpack.c.l.b16 %v122
      %v203 = vunpack.c.l.b16 %v123
      %v204 = vunpack.c.l.b16 %v124
      %v205 = vunpack.c.l.b16 %v125
      %v206 = vunpack.c.l.b16 %v126
      %v207 = vunpack.c.l.b16 %v127
      %v208 = vunpack.c.l.b16 %v128
      %v209 = vunpack.c.l.b16 %v129
      %v210 = vunpack.c.l.b16 %v130
      %v211 = vunpack.c.l.b16 %v131
      %v212 = vunpack.c.l.b16 %v132
      %v213 = vunpack.c.l.b16 %v133
      %v214 = vunpack.c.l.b16 %v134
      %v215 = vunpack.c.l.b16 %v135
      %v216 = vunpack.c.l.b16 %v136
      %v217 = vunpack.c.l.b16 %v137
      %v218 = vunpack.c.l.b16 %v138
      %v219 = vunpack.c.l.b16 %v139
      %v220 = vunpack.c.l.b16 %v140
      %v221 = vunpack.c.l.b16 %v141
      %v222 = vunpack.c.l.b16 %v142
      %v223 = vunpack.c.l.b16 %v143
      %v224 = vpack.c.b16 %v193, %v192
      %v225 = vpack.c.b16 %v195, %v194
      %v226 = vpack.c.b16 %v197, %v196
      %v227 = vpack.c.b16 %v199, %v198
      %v228 = vpack.c.b16 %v201, %v200
      %v229 = vpack.c.b16 %v203, %v202
      %v230 = vpack.c.b16 %v205, %v204
      %v231 = vpack.c.b16 %v207, %v206
      %v232 = vpack.c.b16 %v209, %v208
      %v233 = vpack.c.b16 %v211, %v210
      %v234 = vpack.c.b16 %v213, %v212
      %v235 = vpack.c.b16 %v215, %v214
      %v236 = vpack.c.b16 %v217, %v216
      %v237 = vpack.c.b16 %v219, %v218
      %v238 = vpack.c.b16 %v221, %v220
      %v239 = vpack.c.b16 %v223, %v222
      %v272 = vunpack.c.l.b16 %v144
      %v273 = vunpack.c.l.b16 %v145
      %v274 = vunpack.c.l.b16 %v146
      %v275 = vunpack.c.l.b16 %v147
      %v276 = vunpack.c.l.b16 %v148
      %v277 = vunpack.c.l.b16 %v149
      %v278 = vunpack.c.l.b16 %v150
      %v279 = vunpack.c.l.b16 %v151
      %v280 = vunpack.c.l.b16 %v152
      %v281 = vunpack.c.l.b16 %v153
      %v282 = vunpack.c.l.b16 %v154
      %v283 = vunpack.c.l.b16 %v155
      %v284 = vunpack.c.l.b16 %v156
      %v285 = vunpack.c.l.b16 %v157
      %v286 = vunpack.c.l.b16 %v158
      %v287 = vunpack.c.l.b16 %v159
      %v288 = vpack.c.b16 %v273, %v272
      %v289 = vpack.c.b16 %v275, %v274
      %v290 = vpack.c.b16 %v277, %v276
      %v291 = vpack.c.b16 %v279, %v278
      %v292 = vpack.c.b16 %v281, %v280
      %v293 = vpack.c.b16 %v283, %v282
      %v294 = vpack.c.b16 %v285, %v284
      %v295 = vpack.c.b16 %v287, %v286
      %304 = vmatpush.bf16.msra.mxu0 %v295
      %305 = vmatpush.bf16.msra.mxu0 %v294
      %306 = vmatpush.bf16.msra.mxu0 %v293
      %307 = vmatpush.bf16.msra.mxu0 %v292
      %308 = vmatpush.bf16.msra.mxu0 %v291
      %309 = vmatpush.bf16.msra.mxu0 %v290
      %310 = vmatpush.bf16.msra.mxu0 %v289
      %311 = vmatpush.bf16.msra.mxu0 %v288
      %312 = vmatmul.bf16.gmra.mxu0 %v224
      %v313 = vpop.f32.mrf.mxu0
      %v314 = vadd.f32 0.0, %v313
      %v315 = vpop.f32.mrf.mxu0
      %v316 = vadd.f32 0.0, %v315
      %317 = vmatmul.bf16.gmra.mxu0 %v225
      %v318 = vpop.f32.mrf.mxu0
      %v319 = vadd.f32 0.0, %v318
      %v320 = vpop.f32.mrf.mxu0
      %v321 = vadd.f32 0.0, %v320
      %322 = vmatmul.bf16.gmra.mxu0 %v226
      %v323 = vpop.f32.mrf.mxu0
      %v324 = vadd.f32 0.0, %v323
      %v325 = vpop.f32.mrf.mxu0
      %v326 = vadd.f32 0.0, %v325
      %327 = vmatmul.bf16.gmra.mxu0 %v227
      %v328 = vpop.f32.mrf.mxu0
      %v329 = vadd.f32 0.0, %v328
      %v330 = vpop.f32.mrf.mxu0
      %v331 = vadd.f32 0.0, %v330
      %332 = vmatmul.bf16.gmra.mxu0 %v228
      %v333 = vpop.f32.mrf.mxu0
      %v334 = vadd.f32 0.0, %v333
      %v335 = vpop.f32.mrf.mxu0
      %v336 = vadd.f32 0.0, %v335
      %337 = vmatmul.bf16.gmra.mxu0 %v229
      %v338 = vpop.f32.mrf.mxu0
      %v339 = vadd.f32 0.0, %v338
      %v340 = vpop.f32.mrf.mxu0
      %v341 = vadd.f32 0.0, %v340
      %342 = vmatmul.bf16.gmra.mxu0 %v230
      %v343 = vpop.f32.mrf.mxu0
      %v344 = vadd.f32 0.0, %v343
      %v345 = vpop.f32.mrf.mxu0
      %v346 = vadd.f32 0.0, %v345
      %347 = vmatmul.bf16.gmra.mxu0 %v231
      %v348 = vpop.f32.mrf.mxu0
      %v349 = vadd.f32 0.0, %v348
      %v350 = vpop.f32.mrf.mxu0
      %v351 = vadd.f32 0.0, %v350
      %352 = vmatmul.bf16.gmra.mxu0 %v232
      %v353 = vpop.f32.mrf.mxu0
      %v354 = vadd.f32 0.0, %v353
      %v355 = vpop.f32.mrf.mxu0
      %v356 = vadd.f32 0.0, %v355
      %357 = vmatmul.bf16.gmra.mxu0 %v233
      %v358 = vpop.f32.mrf.mxu0
      %v359 = vadd.f32 0.0, %v358
      %v360 = vpop.f32.mrf.mxu0
      %v361 = vadd.f32 0.0, %v360
      %362 = vmatmul.bf16.gmra.mxu0 %v234
      %v363 = vpop.f32.mrf.mxu0
      %v364 = vadd.f32 0.0, %v363
      %v365 = vpop.f32.mrf.mxu0
      %v366 = vadd.f32 0.0, %v365
      %367 = vmatmul.bf16.gmra.mxu0 %v235
      %v368 = vpop.f32.mrf.mxu0
      %v369 = vadd.f32 0.0, %v368
      %v370 = vpop.f32.mrf.mxu0
      %v371 = vadd.f32 0.0, %v370
      %372 = vmatmul.bf16.gmra.mxu0 %v236
      %v373 = vpop.f32.mrf.mxu0
      %v374 = vadd.f32 0.0, %v373
      %v375 = vpop.f32.mrf.mxu0
      %v376 = vadd.f32 0.0, %v375
      %377 = vmatmul.bf16.gmra.mxu0 %v237
      %v378 = vpop.f32.mrf.mxu0
      %v379 = vadd.f32 0.0, %v378
      %v380 = vpop.f32.mrf.mxu0
      %v381 = vadd.f32 0.0, %v380
      %382 = vmatmul.bf16.gmra.mxu0 %v238
      %v383 = vpop.f32.mrf.mxu0
      %v384 = vadd.f32 0.0, %v383
      %v385 = vpop.f32.mrf.mxu0
      %v386 = vadd.f32 0.0, %v385
      %387 = vmatmul.bf16.gmra.mxu0 %v239
      %v388 = vpop.f32.mrf.mxu0
      %v389 = vadd.f32 0.0, %v388
      %v390 = vpop.f32.mrf.mxu0
      %v391 = vadd.f32 0.0, %v390
      %392 = vdwg.mxu0
      %v393 = vld [vmem:[#allocation3] sm:$0xff]
      %v394 = vld [vmem:[#allocation3 + $0x8] sm:$0xff]
      %v395 = vld [vmem:[#allocation3 + $0x10] sm:$0xff]
      %v396 = vld [vmem:[#allocation3 + $0x18] sm:$0xff]
      %v397 = vld [vmem:[#allocation3 + $0x20] sm:$0xff]
      %v398 = vld [vmem:[#allocation3 + $0x28] sm:$0xff]
      %v399 = vld [vmem:[#allocation3 + $0x30] sm:$0xff]
      %v400 = vld [vmem:[#allocation3 + $0x38] sm:$0xff]
      %v401 = vld [vmem:[#allocation3 + $0x40] sm:$0xff]
      %v402 = vld [vmem:[#allocation3 + $0x48] sm:$0xff]
      %v403 = vld [vmem:[#allocation3 + $0x50] sm:$0xff]
      %v404 = vld [vmem:[#allocation3 + $0x58] sm:$0xff]
      %v405 = vld [vmem:[#allocation3 + $0x60] sm:$0xff]
      %v406 = vld [vmem:[#allocation3 + $0x68] sm:$0xff]
      %v407 = vld [vmem:[#allocation3 + $0x70] sm:$0xff]
      %v408 = vld [vmem:[#allocation3 + $0x78] sm:$0xff]
      %v409 = vld [vmem:[#allocation3 + $0x80] sm:$0xff]
      %v410 = vld [vmem:[#allocation3 + $0x88] sm:$0xff]
      %v411 = vld [vmem:[#allocation3 + $0x90] sm:$0xff]
      %v412 = vld [vmem:[#allocation3 + $0x98] sm:$0xff]
      %v413 = vld [vmem:[#allocation3 + $0xa0] sm:$0xff]
      %v414 = vld [vmem:[#allocation3 + $0xa8] sm:$0xff]
      %v415 = vld [vmem:[#allocation3 + $0xb0] sm:$0xff]
      %v416 = vld [vmem:[#allocation3 + $0xb8] sm:$0xff]
      %v417 = vld [vmem:[#allocation3 + $0xc0] sm:$0xff]
      %v418 = vld [vmem:[#allocation3 + $0xc8] sm:$0xff]
      %v419 = vld [vmem:[#allocation3 + $0xd0] sm:$0xff]
      %v420 = vld [vmem:[#allocation3 + $0xd8] sm:$0xff]
      %v421 = vld [vmem:[#allocation3 + $0xe0] sm:$0xff]
      %v422 = vld [vmem:[#allocation3 + $0xe8] sm:$0xff]
      %v423 = vld [vmem:[#allocation3 + $0xf0] sm:$0xff]
      %v424 = vld [vmem:[#allocation3 + $0xf8] sm:$0xff]
      %v425 = vpack.c.bf16 %v316, %v314
      %v426 = vpack.c.bf16 %v321, %v319
      %v427 = vpack.c.bf16 %v326, %v324
      %v428 = vpack.c.bf16 %v331, %v329
      %v429 = vpack.c.bf16 %v336, %v334
      %v430 = vpack.c.bf16 %v341, %v339
      %v431 = vpack.c.bf16 %v346, %v344
      %v432 = vpack.c.bf16 %v351, %v349
      %v433 = vpack.c.bf16 %v356, %v354
      %v434 = vpack.c.bf16 %v361, %v359
      %v435 = vpack.c.bf16 %v366, %v364
      %v436 = vpack.c.bf16 %v371, %v369
      %v437 = vpack.c.bf16 %v376, %v374
      %v438 = vpack.c.bf16 %v381, %v379
      %v439 = vpack.c.bf16 %v386, %v384
      %v440 = vpack.c.bf16 %v391, %v389
      %v441 = vld [vmem:[%s3] sm:$0x1]
      %v443 = vperm.slane %v441, 0
      %v477 = vunpack.c.l.b16 %v393
      %v478 = vunpack.c.h.b16 %v393
      %v479 = vunpack.c.l.b16 %v394
      %v480 = vunpack.c.h.b16 %v394
      %v481 = vunpack.c.l.b16 %v395
      %v482 = vunpack.c.h.b16 %v395
      %v483 = vunpack.c.l.b16 %v396
      %v484 = vunpack.c.h.b16 %v396
      %v485 = vunpack.c.l.b16 %v397
      %v486 = vunpack.c.h.b16 %v397
      %v487 = vunpack.c.l.b16 %v398
      %v488 = vunpack.c.h.b16 %v398
      %v489 = vunpack.c.l.b16 %v399
      %v490 = vunpack.c.h.b16 %v399
      %v491 = vunpack.c.l.b16 %v400
      %v492 = vunpack.c.h.b16 %v400
      %v493 = vunpack.c.l.b16 %v401
      %v494 = vunpack.c.h.b16 %v401
      %v495 = vunpack.c.l.b16 %v402
      %v496 = vunpack.c.h.b16 %v402
      %v497 = vunpack.c.l.b16 %v403
      %v498 = vunpack.c.h.b16 %v403
      %v499 = vunpack.c.l.b16 %v404
      %v500 = vunpack.c.h.b16 %v404
      %v501 = vunpack.c.l.b16 %v405
      %v502 = vunpack.c.h.b16 %v405
      %v503 = vunpack.c.l.b16 %v406
      %v504 = vunpack.c.h.b16 %v406
      %v505 = vunpack.c.l.b16 %v407
      %v506 = vunpack.c.h.b16 %v407
      %v507 = vunpack.c.l.b16 %v408
      %v508 = vunpack.c.h.b16 %v408
      %v509 = vunpack.c.l.b16 %v409
      %v510 = vunpack.c.h.b16 %v409
      %v511 = vunpack.c.l.b16 %v410
      %v512 = vunpack.c.h.b16 %v410
      %v513 = vunpack.c.l.b16 %v411
      %v514 = vunpack.c.h.b16 %v411
      %v515 = vunpack.c.l.b16 %v412
      %v516 = vunpack.c.h.b16 %v412
      %v517 = vunpack.c.l.b16 %v413
      %v518 = vunpack.c.h.b16 %v413
      %v519 = vunpack.c.l.b16 %v414
      %v520 = vunpack.c.h.b16 %v414
      %v521 = vunpack.c.l.b16 %v415
      %v522 = vunpack.c.h.b16 %v415
      %v523 = vunpack.c.l.b16 %v416
      %v524 = vunpack.c.h.b16 %v416
      %v525 = vunpack.c.l.b16 %v417
      %v526 = vunpack.c.h.b16 %v417
      %v527 = vunpack.c.l.b16 %v418
      %v528 = vunpack.c.h.b16 %v418
      %v529 = vunpack.c.l.b16 %v419
      %v530 = vunpack.c.h.b16 %v419
      %v531 = vunpack.c.l.b16 %v420
      %v532 = vunpack.c.h.b16 %v420
      %v533 = vunpack.c.l.b16 %v421
      %v534 = vunpack.c.h.b16 %v421
      %v535 = vunpack.c.l.b16 %v422
      %v536 = vunpack.c.h.b16 %v422
      %v537 = vunpack.c.l.b16 %v423
      %v538 = vunpack.c.h.b16 %v423
      %v539 = vunpack.c.l.b16 %v424
      %v540 = vunpack.c.h.b16 %v424
      %v541 = vpack.c.b16 %v479, %v477
      %v542 = vpack.c.b16 %v480, %v478
      %v543 = vpack.c.b16 %v483, %v481
      %v544 = vpack.c.b16 %v484, %v482
      %v545 = vpack.c.b16 %v487, %v485
      %v546 = vpack.c.b16 %v488, %v486
      %v547 = vpack.c.b16 %v491, %v489
      %v548 = vpack.c.b16 %v492, %v490
      %v549 = vpack.c.b16 %v495, %v493
      %v550 = vpack.c.b16 %v496, %v494
      %v551 = vpack.c.b16 %v499, %v497
      %v552 = vpack.c.b16 %v500, %v498
      %v553 = vpack.c.b16 %v503, %v501
      %v554 = vpack.c.b16 %v504, %v502
      %v555 = vpack.c.b16 %v507, %v505
      %v556 = vpack.c.b16 %v508, %v506
      %v557 = vpack.c.b16 %v511, %v509
      %v558 = vpack.c.b16 %v512, %v510
      %v559 = vpack.c.b16 %v515, %v513
      %v560 = vpack.c.b16 %v516, %v514
      %v561 = vpack.c.b16 %v519, %v517
      %v562 = vpack.c.b16 %v520, %v518
      %v563 = vpack.c.b16 %v523, %v521
      %v564 = vpack.c.b16 %v524, %v522
      %v565 = vpack.c.b16 %v527, %v525
      %v566 = vpack.c.b16 %v528, %v526
      %v567 = vpack.c.b16 %v531, %v529
      %v568 = vpack.c.b16 %v532, %v530
      %v569 = vpack.c.b16 %v535, %v533
      %v570 = vpack.c.b16 %v536, %v534
      %v571 = vpack.c.b16 %v539, %v537
      %v572 = vpack.c.b16 %v540, %v538
      %605 = vmatpush.bf16.msra.mxu0 %v432
      %606 = vmatpush.bf16.msra.mxu0 %v431
      %607 = vmatpush.bf16.msra.mxu0 %v430
      %608 = vmatpush.bf16.msra.mxu0 %v429
      %609 = vmatpush.bf16.msra.mxu0 %v428
      %610 = vmatpush.bf16.msra.mxu0 %v427
      %611 = vmatpush.bf16.msra.mxu0 %v426
      %612 = vmatpush.bf16.msra.mxu0 %v425
      %613 = vmatmul.bf16.gmra.mxu0 %v541
      %v614 = vpop.f32.mrf.mxu0
      %v615 = vadd.f32 %v443, %v614
      %v616 = vpop.f32.mrf.mxu0
      %v617 = vadd.f32 %v443, %v616
      %618 = vmatmul.bf16.gmra.mxu0 %v543
      %v619 = vpop.f32.mrf.mxu0
      %v620 = vadd.f32 %v443, %v619
      %v621 = vpop.f32.mrf.mxu0
      %v622 = vadd.f32 %v443, %v621
      %623 = vmatmul.bf16.gmra.mxu0 %v545
      %v624 = vpop.f32.mrf.mxu0
      %v625 = vadd.f32 %v443, %v624
      %v626 = vpop.f32.mrf.mxu0
      %v627 = vadd.f32 %v443, %v626
      %628 = vmatmul.bf16.gmra.mxu0 %v547
      %v629 = vpop.f32.mrf.mxu0
      %v630 = vadd.f32 %v443, %v629
      %v631 = vpop.f32.mrf.mxu0
      %v632 = vadd.f32 %v443, %v631
      %633 = vmatmul.bf16.gmra.mxu0 %v549
      %v634 = vpop.f32.mrf.mxu0
      %v635 = vadd.f32 %v443, %v634
      %v636 = vpop.f32.mrf.mxu0
      %v637 = vadd.f32 %v443, %v636
      %638 = vmatmul.bf16.gmra.mxu0 %v551
      %v639 = vpop.f32.mrf.mxu0
      %v640 = vadd.f32 %v443, %v639
      %v641 = vpop.f32.mrf.mxu0
      %v642 = vadd.f32 %v443, %v641
      %643 = vmatmul.bf16.gmra.mxu0 %v553
      %v644 = vpop.f32.mrf.mxu0
      %v645 = vadd.f32 %v443, %v644
      %v646 = vpop.f32.mrf.mxu0
      %v647 = vadd.f32 %v443, %v646
      %648 = vmatmul.bf16.gmra.mxu0 %v555
      %v649 = vpop.f32.mrf.mxu0
      %v650 = vadd.f32 %v443, %v649
      %v651 = vpop.f32.mrf.mxu0
      %v652 = vadd.f32 %v443, %v651
      %653 = vmatmul.bf16.gmra.mxu0 %v557
      %v654 = vpop.f32.mrf.mxu0
      %v655 = vadd.f32 %v443, %v654
      %v656 = vpop.f32.mrf.mxu0
      %v657 = vadd.f32 %v443, %v656
      %658 = vmatmul.bf16.gmra.mxu0 %v559
      %v659 = vpop.f32.mrf.mxu0
      %v660 = vadd.f32 %v443, %v659
      %v661 = vpop.f32.mrf.mxu0
      %v662 = vadd.f32 %v443, %v661
      %663 = vmatmul.bf16.gmra.mxu0 %v561
      %v664 = vpop.f32.mrf.mxu0
      %v665 = vadd.f32 %v443, %v664
      %v666 = vpop.f32.mrf.mxu0
      %v667 = vadd.f32 %v443, %v666
      %668 = vmatmul.bf16.gmra.mxu0 %v563
      %v669 = vpop.f32.mrf.mxu0
      %v670 = vadd.f32 %v443, %v669
      %v671 = vpop.f32.mrf.mxu0
      %v672 = vadd.f32 %v443, %v671
      %673 = vmatmul.bf16.gmra.mxu0 %v565
      %v674 = vpop.f32.mrf.mxu0
      %v675 = vadd.f32 %v443, %v674
      %v676 = vpop.f32.mrf.mxu0
      %v677 = vadd.f32 %v443, %v676
      %678 = vmatmul.bf16.gmra.mxu0 %v567
      %v679 = vpop.f32.mrf.mxu0
      %v680 = vadd.f32 %v443, %v679
      %v681 = vpop.f32.mrf.mxu0
      %v682 = vadd.f32 %v443, %v681
      %683 = vmatmul.bf16.gmra.mxu0 %v569
      %v684 = vpop.f32.mrf.mxu0
      %v685 = vadd.f32 %v443, %v684
      %v686 = vpop.f32.mrf.mxu0
      %v687 = vadd.f32 %v443, %v686
      %688 = vmatmul.bf16.gmra.mxu0 %v571
      %v689 = vpop.f32.mrf.mxu0
      %v690 = vadd.f32 %v443, %v689
      %v691 = vpop.f32.mrf.mxu0
      %v692 = vadd.f32 %v443, %v691
      %693 = vdwg.mxu0
      %694 = vmatpush.bf16.msra.mxu0 %v440
      %695 = vmatpush.bf16.msra.mxu0 %v439
      %696 = vmatpush.bf16.msra.mxu0 %v438
      %697 = vmatpush.bf16.msra.mxu0 %v437
      %698 = vmatpush.bf16.msra.mxu0 %v436
      %699 = vmatpush.bf16.msra.mxu0 %v435
      %700 = vmatpush.bf16.msra.mxu0 %v434
      %701 = vmatpush.bf16.msra.mxu0 %v433
      %702 = vmatmul.bf16.gmra.mxu0 %v542
      %v703 = vpop.f32.mrf.mxu0
      %v704 = vadd.f32 %v615, %v703
      %v705 = vpop.f32.mrf.mxu0
      %v706 = vadd.f32 %v617, %v705
      %707 = vmatmul.bf16.gmra.mxu0 %v544
      %v708 = vpop.f32.mrf.mxu0
      %v709 = vadd.f32 %v620, %v708
      %v710 = vpop.f32.mrf.mxu0
      %v711 = vadd.f32 %v622, %v710
      %712 = vmatmul.bf16.gmra.mxu0 %v546
      %v713 = vpop.f32.mrf.mxu0
      %v714 = vadd.f32 %v625, %v713
      %v715 = vpop.f32.mrf.mxu0
      %v716 = vadd.f32 %v627, %v715
      %717 = vmatmul.bf16.gmra.mxu0 %v548
      %v718 = vpop.f32.mrf.mxu0
      %v719 = vadd.f32 %v630, %v718
      %v720 = vpop.f32.mrf.mxu0
      %v721 = vadd.f32 %v632, %v720
      %722 = vmatmul.bf16.gmra.mxu0 %v550
      %v723 = vpop.f32.mrf.mxu0
      %v724 = vadd.f32 %v635, %v723
      %v725 = vpop.f32.mrf.mxu0
      %v726 = vadd.f32 %v637, %v725
      %727 = vmatmul.bf16.gmra.mxu0 %v552
      %v728 = vpop.f32.mrf.mxu0
      %v729 = vadd.f32 %v640, %v728
      %v730 = vpop.f32.mrf.mxu0
      %v731 = vadd.f32 %v642, %v730
      %732 = vmatmul.bf16.gmra.mxu0 %v554
      %v733 = vpop.f32.mrf.mxu0
      %v734 = vadd.f32 %v645, %v733
      %v735 = vpop.f32.mrf.mxu0
      %v736 = vadd.f32 %v647, %v735
      %737 = vmatmul.bf16.gmra.mxu0 %v556
      %v738 = vpop.f32.mrf.mxu0
      %v739 = vadd.f32 %v650, %v738
      %v740 = vpop.f32.mrf.mxu0
      %v741 = vadd.f32 %v652, %v740
      %742 = vmatmul.bf16.gmra.mxu0 %v558
      %v743 = vpop.f32.mrf.mxu0
      %v744 = vadd.f32 %v655, %v743
      %v745 = vpop.f32.mrf.mxu0
      %v746 = vadd.f32 %v657, %v745
      %747 = vmatmul.bf16.gmra.mxu0 %v560
      %v748 = vpop.f32.mrf.mxu0
      %v749 = vadd.f32 %v660, %v748
      %v750 = vpop.f32.mrf.mxu0
      %v751 = vadd.f32 %v662, %v750
      %752 = vmatmul.bf16.gmra.mxu0 %v562
      %v753 = vpop.f32.mrf.mxu0
      %v754 = vadd.f32 %v665, %v753
      %v755 = vpop.f32.mrf.mxu0
      %v756 = vadd.f32 %v667, %v755
      %757 = vmatmul.bf16.gmra.mxu0 %v564
      %v758 = vpop.f32.mrf.mxu0
      %v759 = vadd.f32 %v670, %v758
      %v760 = vpop.f32.mrf.mxu0
      %v761 = vadd.f32 %v672, %v760
      %762 = vmatmul.bf16.gmra.mxu0 %v566
      %v763 = vpop.f32.mrf.mxu0
      %v764 = vadd.f32 %v675, %v763
      %v765 = vpop.f32.mrf.mxu0
      %v766 = vadd.f32 %v677, %v765
      %767 = vmatmul.bf16.gmra.mxu0 %v568
      %v768 = vpop.f32.mrf.mxu0
      %v769 = vadd.f32 %v680, %v768
      %v770 = vpop.f32.mrf.mxu0
      %v771 = vadd.f32 %v682, %v770
      %772 = vmatmul.bf16.gmra.mxu0 %v570
      %v773 = vpop.f32.mrf.mxu0
      %v774 = vadd.f32 %v685, %v773
      %v775 = vpop.f32.mrf.mxu0
      %v776 = vadd.f32 %v687, %v775
      %777 = vmatmul.bf16.gmra.mxu0 %v572
      %v778 = vpop.f32.mrf.mxu0
      %v779 = vadd.f32 %v690, %v778
      %v780 = vpop.f32.mrf.mxu0
      %v781 = vadd.f32 %v692, %v780
      %782 = vdwg.mxu0
      %v783 = vpack.c.bf16 %v706, %v704
      %v784 = vpack.c.bf16 %v711, %v709
      %v785 = vpack.c.bf16 %v716, %v714
      %v786 = vpack.c.bf16 %v721, %v719
      %v787 = vpack.c.bf16 %v726, %v724
      %v788 = vpack.c.bf16 %v731, %v729
      %v789 = vpack.c.bf16 %v736, %v734
      %v790 = vpack.c.bf16 %v741, %v739
      %v791 = vpack.c.bf16 %v746, %v744
      %v792 = vpack.c.bf16 %v751, %v749
      %v793 = vpack.c.bf16 %v756, %v754
      %v794 = vpack.c.bf16 %v761, %v759
      %v795 = vpack.c.bf16 %v766, %v764
      %v796 = vpack.c.bf16 %v771, %v769
      %v797 = vpack.c.bf16 %v776, %v774
      %v798 = vpack.c.bf16 %v781, %v779
      %v799 = vld [vmem:[#allocation9] sm:$0xf]
      %v800 = vld [vmem:[#allocation9 + $0x4] sm:$0xf]
      %v801 = vld [vmem:[#allocation9 + $0x8] sm:$0xf]
      %v802 = vld [vmem:[#allocation9 + $0xc] sm:$0xf]
      %v803 = vld [vmem:[#allocation9 + $0x10] sm:$0xf]
      %v804 = vld [vmem:[#allocation9 + $0x14] sm:$0xf]
      %v805 = vld [vmem:[#allocation9 + $0x18] sm:$0xf]
      %v806 = vld [vmem:[#allocation9 + $0x1c] sm:$0xf]
      %v807 = vld [vmem:[#allocation9 + $0x20] sm:$0xf]
      %v808 = vld [vmem:[#allocation9 + $0x24] sm:$0xf]
      %v809 = vld [vmem:[#allocation9 + $0x28] sm:$0xf]
      %v810 = vld [vmem:[#allocation9 + $0x2c] sm:$0xf]
      %v811 = vld [vmem:[#allocation9 + $0x30] sm:$0xf]
      %v812 = vld [vmem:[#allocation9 + $0x34] sm:$0xf]
      %v813 = vld [vmem:[#allocation9 + $0x38] sm:$0xf]
      %v814 = vld [vmem:[#allocation9 + $0x3c] sm:$0xf]
      %v831 = vunpack.c.l.b16 %v799
      %v832 = vunpack.c.l.b16 %v800
      %v833 = vunpack.c.l.b16 %v801
      %v834 = vunpack.c.l.b16 %v802
      %v835 = vunpack.c.l.b16 %v803
      %v836 = vunpack.c.l.b16 %v804
      %v837 = vunpack.c.l.b16 %v805
      %v838 = vunpack.c.l.b16 %v806
      %v839 = vunpack.c.l.b16 %v807
      %v840 = vunpack.c.l.b16 %v808
      %v841 = vunpack.c.l.b16 %v809
      %v842 = vunpack.c.l.b16 %v810
      %v843 = vunpack.c.l.b16 %v811
      %v844 = vunpack.c.l.b16 %v812
      %v845 = vunpack.c.l.b16 %v813
      %v846 = vunpack.c.l.b16 %v814
      %v847 = vpack.c.b16 %v832, %v831
      %v848 = vpack.c.b16 %v834, %v833
      %v849 = vpack.c.b16 %v836, %v835
      %v850 = vpack.c.b16 %v838, %v837
      %v851 = vpack.c.b16 %v840, %v839
      %v852 = vpack.c.b16 %v842, %v841
      %v853 = vpack.c.b16 %v844, %v843
      %v854 = vpack.c.b16 %v846, %v845
      %863 = vmatpush.bf16.msra.mxu0 %v854
      %864 = vmatpush.bf16.msra.mxu0 %v853
      %865 = vmatpush.bf16.msra.mxu0 %v852
      %866 = vmatpush.bf16.msra.mxu0 %v851
      %867 = vmatpush.bf16.msra.mxu0 %v850
      %868 = vmatpush.bf16.msra.mxu0 %v849
      %869 = vmatpush.bf16.msra.mxu0 %v848
      %870 = vmatpush.bf16.msra.mxu0 %v847
      %871 = vmatmul.bf16.gmra.mxu0 %v783
      %v872 = vpop.f32.mrf.mxu0
      %v873 = vadd.f32 0.0, %v872
      %v874 = vpop.f32.mrf.mxu0
      %v875 = vadd.f32 0.0, %v874
      %876 = vmatmul.bf16.gmra.mxu0 %v784
      %v877 = vpop.f32.mrf.mxu0
      %v878 = vadd.f32 0.0, %v877
      %v879 = vpop.f32.mrf.mxu0
      %v880 = vadd.f32 0.0, %v879
      %881 = vmatmul.bf16.gmra.mxu0 %v785
      %v882 = vpop.f32.mrf.mxu0
      %v883 = vadd.f32 0.0, %v882
      %v884 = vpop.f32.mrf.mxu0
      %v885 = vadd.f32 0.0, %v884
      %886 = vmatmul.bf16.gmra.mxu0 %v786
      %v887 = vpop.f32.mrf.mxu0
      %v888 = vadd.f32 0.0, %v887
      %v889 = vpop.f32.mrf.mxu0
      %v890 = vadd.f32 0.0, %v889
      %891 = vmatmul.bf16.gmra.mxu0 %v787
      %v892 = vpop.f32.mrf.mxu0
      %v893 = vadd.f32 0.0, %v892
      %v894 = vpop.f32.mrf.mxu0
      %v895 = vadd.f32 0.0, %v894
      %896 = vmatmul.bf16.gmra.mxu0 %v788
      %v897 = vpop.f32.mrf.mxu0
      %v898 = vadd.f32 0.0, %v897
      %v899 = vpop.f32.mrf.mxu0
      %v900 = vadd.f32 0.0, %v899
      %901 = vmatmul.bf16.gmra.mxu0 %v789
      %v902 = vpop.f32.mrf.mxu0
      %v903 = vadd.f32 0.0, %v902
      %v904 = vpop.f32.mrf.mxu0
      %v905 = vadd.f32 0.0, %v904
      %906 = vmatmul.bf16.gmra.mxu0 %v790
      %v907 = vpop.f32.mrf.mxu0
      %v908 = vadd.f32 0.0, %v907
      %v909 = vpop.f32.mrf.mxu0
      %v910 = vadd.f32 0.0, %v909
      %911 = vmatmul.bf16.gmra.mxu0 %v791
      %v912 = vpop.f32.mrf.mxu0
      %v913 = vadd.f32 0.0, %v912
      %v914 = vpop.f32.mrf.mxu0
      %v915 = vadd.f32 0.0, %v914
      %916 = vmatmul.bf16.gmra.mxu0 %v792
      %v917 = vpop.f32.mrf.mxu0
      %v918 = vadd.f32 0.0, %v917
      %v919 = vpop.f32.mrf.mxu0
      %v920 = vadd.f32 0.0, %v919
      %921 = vmatmul.bf16.gmra.mxu0 %v793
      %v922 = vpop.f32.mrf.mxu0
      %v923 = vadd.f32 0.0, %v922
      %v924 = vpop.f32.mrf.mxu0
      %v925 = vadd.f32 0.0, %v924
      %926 = vmatmul.bf16.gmra.mxu0 %v794
      %v927 = vpop.f32.mrf.mxu0
      %v928 = vadd.f32 0.0, %v927
      %v929 = vpop.f32.mrf.mxu0
      %v930 = vadd.f32 0.0, %v929
      %931 = vmatmul.bf16.gmra.mxu0 %v795
      %v932 = vpop.f32.mrf.mxu0
      %v933 = vadd.f32 0.0, %v932
      %v934 = vpop.f32.mrf.mxu0
      %v935 = vadd.f32 0.0, %v934
      %936 = vmatmul.bf16.gmra.mxu0 %v796
      %v937 = vpop.f32.mrf.mxu0
      %v938 = vadd.f32 0.0, %v937
      %v939 = vpop.f32.mrf.mxu0
      %v940 = vadd.f32 0.0, %v939
      %941 = vmatmul.bf16.gmra.mxu0 %v797
      %v942 = vpop.f32.mrf.mxu0
      %v943 = vadd.f32 0.0, %v942
      %v944 = vpop.f32.mrf.mxu0
      %v945 = vadd.f32 0.0, %v944
      %946 = vmatmul.bf16.gmra.mxu0 %v798
      %v947 = vpop.f32.mrf.mxu0
      %v948 = vadd.f32 0.0, %v947
      %v949 = vpop.f32.mrf.mxu0
      %v950 = vadd.f32 0.0, %v949
      %951 = vdwg.mxu0
      %v952 = vpack.c.bf16 %v873, %v873
      %v953 = vpack.c.bf16 %v875, %v875
      %v954 = vpack.c.bf16 %v878, %v878
      %v955 = vpack.c.bf16 %v880, %v880
      %v956 = vpack.c.bf16 %v883, %v883
      %v957 = vpack.c.bf16 %v885, %v885
      %v958 = vpack.c.bf16 %v888, %v888
      %v959 = vpack.c.bf16 %v890, %v890
      %v960 = vpack.c.bf16 %v893, %v893
      %v961 = vpack.c.bf16 %v895, %v895
      %v962 = vpack.c.bf16 %v898, %v898
      %v963 = vpack.c.bf16 %v900, %v900
      %v964 = vpack.c.bf16 %v903, %v903
      %v965 = vpack.c.bf16 %v905, %v905
      %v966 = vpack.c.bf16 %v908, %v908
      %v967 = vpack.c.bf16 %v910, %v910
      %v968 = vpack.c.bf16 %v913, %v913
      %v969 = vpack.c.bf16 %v915, %v915
      %v970 = vpack.c.bf16 %v918, %v918
      %v971 = vpack.c.bf16 %v920, %v920
      %v972 = vpack.c.bf16 %v923, %v923
      %v973 = vpack.c.bf16 %v925, %v925
      %v974 = vpack.c.bf16 %v928, %v928
      %v975 = vpack.c.bf16 %v930, %v930
      %v976 = vpack.c.bf16 %v933, %v933
      %v977 = vpack.c.bf16 %v935, %v935
      %v978 = vpack.c.bf16 %v938, %v938
      %v979 = vpack.c.bf16 %v940, %v940
      %v980 = vpack.c.bf16 %v943, %v943
      %v981 = vpack.c.bf16 %v945, %v945
      %v982 = vpack.c.bf16 %v948, %v948
      %v983 = vpack.c.bf16 %v950, %v950
      %984 = vst [vmem:[#allocation2] sm:$0xf] %v952
      %985 = vst [vmem:[#allocation2 + $0x4] sm:$0xf] %v953
      %986 = vst [vmem:[#allocation2 + $0x8] sm:$0xf] %v954
      %987 = vst [vmem:[#allocation2 + $0xc] sm:$0xf] %v955
      %988 = vst [vmem:[#allocation2 + $0x10] sm:$0xf] %v956
      %989 = vst [vmem:[#allocation2 + $0x14] sm:$0xf] %v957
      %990 = vst [vmem:[#allocation2 + $0x18] sm:$0xf] %v958
      %991 = vst [vmem:[#allocation2 + $0x1c] sm:$0xf] %v959
      %992 = vst [vmem:[#allocation2 + $0x20] sm:$0xf] %v960
      %993 = vst [vmem:[#allocation2 + $0x24] sm:$0xf] %v961
      %994 = vst [vmem:[#allocation2 + $0x28] sm:$0xf] %v962
      %995 = vst [vmem:[#allocation2 + $0x2c] sm:$0xf] %v963
      %996 = vst [vmem:[#allocation2 + $0x30] sm:$0xf] %v964
      %997 = vst [vmem:[#allocation2 + $0x34] sm:$0xf] %v965
      %998 = vst [vmem:[#allocation2 + $0x38] sm:$0xf] %v966
      %999 = vst [vmem:[#allocation2 + $0x3c] sm:$0xf] %v967
      %1000 = vst [vmem:[#allocation2 + $0x40] sm:$0xf] %v968
      %1001 = vst [vmem:[#allocation2 + $0x44] sm:$0xf] %v969
      %1002 = vst [vmem:[#allocation2 + $0x48] sm:$0xf] %v970
      %1003 = vst [vmem:[#allocation2 + $0x4c] sm:$0xf] %v971
      %1004 = vst [vmem:[#allocation2 + $0x50] sm:$0xf] %v972
      %1005 = vst [vmem:[#allocation2 + $0x54] sm:$0xf] %v973
      %1006 = vst [vmem:[#allocation2 + $0x58] sm:$0xf] %v974
      %1007 = vst [vmem:[#allocation2 + $0x5c] sm:$0xf] %v975
      %1008 = vst [vmem:[#allocation2 + $0x60] sm:$0xf] %v976
      %1009 = vst [vmem:[#allocation2 + $0x64] sm:$0xf] %v977
      %1010 = vst [vmem:[#allocation2 + $0x68] sm:$0xf] %v978
      %1011 = vst [vmem:[#allocation2 + $0x6c] sm:$0xf] %v979
      %1012 = vst [vmem:[#allocation2 + $0x70] sm:$0xf] %v980
      %1013 = vst [vmem:[#allocation2 + $0x74] sm:$0xf] %v981
      %1014 = vst [vmem:[#allocation2 + $0x78] sm:$0xf] %v982
      %1015 = vst [vmem:[#allocation2 + $0x7c] sm:$0xf] %v983
    $region57: #{tpu_custom_call.1} parent=1 // pred_fallthru
      _
    %s1016 = smul.u32 0, 256
    %s1017 = sshra.s32 %s1016, 3
    %s1018 = sand.u32 %s1016, 7
    %s1019 = smul.u32 %s1017, 2
    %s1020 = smul.addr %s1019, 4
    %s1021 = scalar_lea.vmem [#allocation3], %s1020
    %v1022 = vld [vmem:[%s1021] sm:$0xff]
    %v1023 = vld [vmem:[%s1021 + $0x8] sm:$0xff]
    %v1024 = vld [vmem:[%s1021 + $0x10] sm:$0xff]
    %v1025 = vld [vmem:[%s1021 + $0x18] sm:$0xff]
    %v1026 = vld [vmem:[%s1021 + $0x20] sm:$0xff]
    %v1027 = vld [vmem:[%s1021 + $0x28] sm:$0xff]
    %v1028 = vld [vmem:[%s1021 + $0x30] sm:$0xff]
    %v1029 = vld [vmem:[%s1021 + $0x38] sm:$0xff]
    %v1030 = vld [vmem:[%s1021 + $0x40] sm:$0xff]
    %v1031 = vld [vmem:[%s1021 + $0x48] sm:$0xff]
    %v1032 = vld [vmem:[%s1021 + $0x50] sm:$0xff]
    %v1033 = vld [vmem:[%s1021 + $0x58] sm:$0xff]
    %v1034 = vld [vmem:[%s1021 + $0x60] sm:$0xff]
    %v1035 = vld [vmem:[%s1021 + $0x68] sm:$0xff]
    %v1036 = vld [vmem:[%s1021 + $0x70] sm:$0xff]
    %v1037 = vld [vmem:[%s1021 + $0x78] sm:$0xff]
    %v1038 = vld [vmem:[%s1021 + $0x80] sm:$0xff]
    %v1039 = vld [vmem:[%s1021 + $0x88] sm:$0xff]
    %v1040 = vld [vmem:[%s1021 + $0x90] sm:$0xff]
    %v1041 = vld [vmem:[%s1021 + $0x98] sm:$0xff]
    %v1042 = vld [vmem:[%s1021 + $0xa0] sm:$0xff]
    %v1043 = vld [vmem:[%s1021 + $0xa8] sm:$0xff]
    %v1044 = vld [vmem:[%s1021 + $0xb0] sm:$0xff]
    %v1045 = vld [vmem:[%s1021 + $0xb8] sm:$0xff]
    %v1046 = vld [vmem:[%s1021 + $0xc0] sm:$0xff]
    %v1047 = vld [vmem:[%s1021 + $0xc8] sm:$0xff]
    %v1048 = vld [vmem:[%s1021 + $0xd0] sm:$0xff]
    %v1049 = vld [vmem:[%s1021 + $0xd8] sm:$0xff]
    %v1050 = vld [vmem:[%s1021 + $0xe0] sm:$0xff]
    %v1051 = vld [vmem:[%s1021 + $0xe8] sm:$0xff]
    %v1052 = vld [vmem:[%s1021 + $0xf0] sm:$0xff]
    %v1053 = vld [vmem:[%s1021 + $0xf8] sm:$0xff]
    %v1054 = vld [vmem:[#allocation2] sm:$0xf]
    %v1055 = vld [vmem:[#allocation2 + $0x4] sm:$0xf]
    %v1056 = vld [vmem:[#allocation2 + $0x8] sm:$0xf]
    %v1057 = vld [vmem:[#allocation2 + $0xc] sm:$0xf]
    %v1058 = vld [vmem:[#allocation2 + $0x10] sm:$0xf]
    %v1059 = vld [vmem:[#allocation2 + $0x14] sm:$0xf]
    %v1060 = vld [vmem:[#allocation2 + $0x18] sm:$0xf]
    %v1061 = vld [vmem:[#allocation2 + $0x1c] sm:$0xf]
    %v1062 = vld [vmem:[#allocation2 + $0x20] sm:$0xf]
    %v1063 = vld [vmem:[#allocation2 + $0x24] sm:$0xf]
    %v1064 = vld [vmem:[#allocation2 + $0x28] sm:$0xf]
    %v1065 = vld [vmem:[#allocation2 + $0x2c] sm:$0xf]
    %v1066 = vld [vmem:[#allocation2 + $0x30] sm:$0xf]
    %v1067 = vld [vmem:[#allocation2 + $0x34] sm:$0xf]
    %v1068 = vld [vmem:[#allocation2 + $0x38] sm:$0xf]
    %v1069 = vld [vmem:[#allocation2 + $0x3c] sm:$0xf]
    %v1070 = vld [vmem:[#allocation2 + $0x40] sm:$0xf]
    %v1071 = vld [vmem:[#allocation2 + $0x44] sm:$0xf]
    %v1072 = vld [vmem:[#allocation2 + $0x48] sm:$0xf]
    %v1073 = vld [vmem:[#allocation2 + $0x4c] sm:$0xf]
    %v1074 = vld [vmem:[#allocation2 + $0x50] sm:$0xf]
    %v1075 = vld [vmem:[#allocation2 + $0x54] sm:$0xf]
    %v1076 = vld [vmem:[#allocation2 + $0x58] sm:$0xf]
    %v1077 = vld [vmem:[#allocation2 + $0x5c] sm:$0xf]
    %v1078 = vld [vmem:[#allocation2 + $0x60] sm:$0xf]
    %v1079 = vld [vmem:[#allocation2 + $0x64] sm:$0xf]
    %v1080 = vld [vmem:[#allocation2 + $0x68] sm:$0xf]
    %v1081 = vld [vmem:[#allocation2 + $0x6c] sm:$0xf]
    %v1082 = vld [vmem:[#allocation2 + $0x70] sm:$0xf]
    %v1083 = vld [vmem:[#allocation2 + $0x74] sm:$0xf]
    %v1084 = vld [vmem:[#allocation2 + $0x78] sm:$0xf]
    %v1085 = vld [vmem:[#allocation2 + $0x7c] sm:$0xf]
    %v1086 = vld [vmem:[%s5] sm:$0x1]
    %v1088 = vperm.slane %v1086, 0
    %v1122 = vunpack.c.l.b16 %v1022
    %v1123 = vunpack.c.h.b16 %v1022
    %v1124 = vunpack.c.l.b16 %v1023
    %v1125 = vunpack.c.h.b16 %v1023
    %v1126 = vunpack.c.l.b16 %v1024
    %v1127 = vunpack.c.h.b16 %v1024
    %v1128 = vunpack.c.l.b16 %v1025
    %v1129 = vunpack.c.h.b16 %v1025
    %v1130 = vunpack.c.l.b16 %v1026
    %v1131 = vunpack.c.h.b16 %v1026
    %v1132 = vunpack.c.l.b16 %v1027
    %v1133 = vunpack.c.h.b16 %v1027
    %v1134 = vunpack.c.l.b16 %v1028
    %v1135 = vunpack.c.h.b16 %v1028
    %v1136 = vunpack.c.l.b16 %v1029
    %v1137 = vunpack.c.h.b16 %v1029
    %v1138 = vunpack.c.l.b16 %v1030
    %v1139 = vunpack.c.h.b16 %v1030
    %v1140 = vunpack.c.l.b16 %v1031
    %v1141 = vunpack.c.h.b16 %v1031
    %v1142 = vunpack.c.l.b16 %v1032
    %v1143 = vunpack.c.h.b16 %v1032
    %v1144 = vunpack.c.l.b16 %v1033
    %v1145 = vunpack.c.h.b16 %v1033
    %v1146 = vunpack.c.l.b16 %v1034
    %v1147 = vunpack.c.h.b16 %v1034
    %v1148 = vunpack.c.l.b16 %v1035
    %v1149 = vunpack.c.h.b16 %v1035
    %v1150 = vunpack.c.l.b16 %v1036
    %v1151 = vunpack.c.h.b16 %v1036
    %v1152 = vunpack.c.l.b16 %v1037
    %v1153 = vunpack.c.h.b16 %v1037
    %v1154 = vunpack.c.l.b16 %v1038
    %v1155 = vunpack.c.h.b16 %v1038
    %v1156 = vunpack.c.l.b16 %v1039
    %v1157 = vunpack.c.h.b16 %v1039
    %v1158 = vunpack.c.l.b16 %v1040
    %v1159 = vunpack.c.h.b16 %v1040
    %v1160 = vunpack.c.l.b16 %v1041
    %v1161 = vunpack.c.h.b16 %v1041
    %v1162 = vunpack.c.l.b16 %v1042
    %v1163 = vunpack.c.h.b16 %v1042
    %v1164 = vunpack.c.l.b16 %v1043
    %v1165 = vunpack.c.h.b16 %v1043
    %v1166 = vunpack.c.l.b16 %v1044
    %v1167 = vunpack.c.h.b16 %v1044
    %v1168 = vunpack.c.l.b16 %v1045
    %v1169 = vunpack.c.h.b16 %v1045
    %v1170 = vunpack.c.l.b16 %v1046
    %v1171 = vunpack.c.h.b16 %v1046
    %v1172 = vunpack.c.l.b16 %v1047
    %v1173 = vunpack.c.h.b16 %v1047
    %v1174 = vunpack.c.l.b16 %v1048
    %v1175 = vunpack.c.h.b16 %v1048
    %v1176 = vunpack.c.l.b16 %v1049
    %v1177 = vunpack.c.h.b16 %v1049
    %v1178 = vunpack.c.l.b16 %v1050
    %v1179 = vunpack.c.h.b16 %v1050
    %v1180 = vunpack.c.l.b16 %v1051
    %v1181 = vunpack.c.h.b16 %v1051
    %v1182 = vunpack.c.l.b16 %v1052
    %v1183 = vunpack.c.h.b16 %v1052
    %v1184 = vunpack.c.l.b16 %v1053
    %v1185 = vunpack.c.h.b16 %v1053
    %v1186 = vpack.c.b16 %v1124, %v1122
    %v1187 = vpack.c.b16 %v1125, %v1123
    %v1188 = vpack.c.b16 %v1128, %v1126
    %v1189 = vpack.c.b16 %v1129, %v1127
    %v1190 = vpack.c.b16 %v1132, %v1130
    %v1191 = vpack.c.b16 %v1133, %v1131
    %v1192 = vpack.c.b16 %v1136, %v1134
    %v1193 = vpack.c.b16 %v1137, %v1135
    %v1194 = vpack.c.b16 %v1140, %v1138
    %v1195 = vpack.c.b16 %v1141, %v1139
    %v1196 = vpack.c.b16 %v1144, %v1142
    %v1197 = vpack.c.b16 %v1145, %v1143
    %v1198 = vpack.c.b16 %v1148, %v1146
    %v1199 = vpack.c.b16 %v1149, %v1147
    %v1200 = vpack.c.b16 %v1152, %v1150
    %v1201 = vpack.c.b16 %v1153, %v1151
    %v1202 = vpack.c.b16 %v1156, %v1154
    %v1203 = vpack.c.b16 %v1157, %v1155
    %v1204 = vpack.c.b16 %v1160, %v1158
    %v1205 = vpack.c.b16 %v1161, %v1159
    %v1206 = vpack.c.b16 %v1164, %v1162
    %v1207 = vpack.c.b16 %v1165, %v1163
    %v1208 = vpack.c.b16 %v1168, %v1166
    %v1209 = vpack.c.b16 %v1169, %v1167
    %v1210 = vpack.c.b16 %v1172, %v1170
    %v1211 = vpack.c.b16 %v1173, %v1171
    %v1212 = vpack.c.b16 %v1176, %v1174
    %v1213 = vpack.c.b16 %v1177, %v1175
    %v1214 = vpack.c.b16 %v1180, %v1178
    %v1215 = vpack.c.b16 %v1181, %v1179
    %v1216 = vpack.c.b16 %v1184, %v1182
    %v1217 = vpack.c.b16 %v1185, %v1183
    %v1282 = vunpack.c.l.b16 %v1054
    %v1283 = vunpack.c.l.b16 %v1055
    %v1284 = vunpack.c.l.b16 %v1056
    %v1285 = vunpack.c.l.b16 %v1057
    %v1286 = vunpack.c.l.b16 %v1058
    %v1287 = vunpack.c.l.b16 %v1059
    %v1288 = vunpack.c.l.b16 %v1060
    %v1289 = vunpack.c.l.b16 %v1061
    %v1290 = vunpack.c.l.b16 %v1062
    %v1291 = vunpack.c.l.b16 %v1063
    %v1292 = vunpack.c.l.b16 %v1064
    %v1293 = vunpack.c.l.b16 %v1065
    %v1294 = vunpack.c.l.b16 %v1066
    %v1295 = vunpack.c.l.b16 %v1067
    %v1296 = vunpack.c.l.b16 %v1068
    %v1297 = vunpack.c.l.b16 %v1069
    %v1298 = vunpack.c.l.b16 %v1070
    %v1299 = vunpack.c.l.b16 %v1071
    %v1300 = vunpack.c.l.b16 %v1072
    %v1301 = vunpack.c.l.b16 %v1073
    %v1302 = vunpack.c.l.b16 %v1074
    %v1303 = vunpack.c.l.b16 %v1075
    %v1304 = vunpack.c.l.b16 %v1076
    %v1305 = vunpack.c.l.b16 %v1077
    %v1306 = vunpack.c.l.b16 %v1078
    %v1307 = vunpack.c.l.b16 %v1079
    %v1308 = vunpack.c.l.b16 %v1080
    %v1309 = vunpack.c.l.b16 %v1081
    %v1310 = vunpack.c.l.b16 %v1082
    %v1311 = vunpack.c.l.b16 %v1083
    %v1312 = vunpack.c.l.b16 %v1084
    %v1313 = vunpack.c.l.b16 %v1085
    %v1314 = vpack.c.b16 %v1283, %v1282
    %v1315 = vpack.c.b16 %v1285, %v1284
    %v1316 = vpack.c.b16 %v1287, %v1286
    %v1317 = vpack.c.b16 %v1289, %v1288
    %v1318 = vpack.c.b16 %v1291, %v1290
    %v1319 = vpack.c.b16 %v1293, %v1292
    %v1320 = vpack.c.b16 %v1295, %v1294
    %v1321 = vpack.c.b16 %v1297, %v1296
    %v1322 = vpack.c.b16 %v1299, %v1298
    %v1323 = vpack.c.b16 %v1301, %v1300
    %v1324 = vpack.c.b16 %v1303, %v1302
    %v1325 = vpack.c.b16 %v1305, %v1304
    %v1326 = vpack.c.b16 %v1307, %v1306
    %v1327 = vpack.c.b16 %v1309, %v1308
    %v1328 = vpack.c.b16 %v1311, %v1310
    %v1329 = vpack.c.b16 %v1313, %v1312
    %1346 = vmatpush.bf16.msra.mxu0 %v1321
    %1347 = vmatpush.bf16.msra.mxu0 %v1320
    %1348 = vmatpush.bf16.msra.mxu0 %v1319
    %1349 = vmatpush.bf16.msra.mxu0 %v1318
    %1350 = vmatpush.bf16.msra.mxu0 %v1317
    %1351 = vmatpush.bf16.msra.mxu0 %v1316
    %1352 = vmatpush.bf16.msra.mxu0 %v1315
    %1353 = vmatpush.bf16.msra.mxu0 %v1314
    %1354 = vmatmul.bf16.gmra.mxu0 %v1186
    %v1355 = vpop.f32.mrf.mxu0
    %v1356 = vadd.f32 %v1088, %v1355
    %v1357 = vpop.f32.mrf.mxu0
    %v1358 = vadd.f32 %v1088, %v1357
    %1359 = vmatmul.bf16.gmra.mxu0 %v1188
    %v1360 = vpop.f32.mrf.mxu0
    %v1361 = vadd.f32 %v1088, %v1360
    %v1362 = vpop.f32.mrf.mxu0
    %v1363 = vadd.f32 %v1088, %v1362
    %1364 = vmatmul.bf16.gmra.mxu0 %v1190
    %v1365 = vpop.f32.mrf.mxu0
    %v1366 = vadd.f32 %v1088, %v1365
    %v1367 = vpop.f32.mrf.mxu0
    %v1368 = vadd.f32 %v1088, %v1367
    %1369 = vmatmul.bf16.gmra.mxu0 %v1192
    %v1370 = vpop.f32.mrf.mxu0
    %v1371 = vadd.f32 %v1088, %v1370
    %v1372 = vpop.f32.mrf.mxu0
    %v1373 = vadd.f32 %v1088, %v1372
    %1374 = vmatmul.bf16.gmra.mxu0 %v1194
    %v1375 = vpop.f32.mrf.mxu0
    %v1376 = vadd.f32 %v1088, %v1375
    %v1377 = vpop.f32.mrf.mxu0
    %v1378 = vadd.f32 %v1088, %v1377
    %1379 = vmatmul.bf16.gmra.mxu0 %v1196
    %v1380 = vpop.f32.mrf.mxu0
    %v1381 = vadd.f32 %v1088, %v1380
    %v1382 = vpop.f32.mrf.mxu0
    %v1383 = vadd.f32 %v1088, %v1382
    %1384 = vmatmul.bf16.gmra.mxu0 %v1198
    %v1385 = vpop.f32.mrf.mxu0
    %v1386 = vadd.f32 %v1088, %v1385
    %v1387 = vpop.f32.mrf.mxu0
    %v1388 = vadd.f32 %v1088, %v1387
    %1389 = vmatmul.bf16.gmra.mxu0 %v1200
    %v1390 = vpop.f32.mrf.mxu0
    %v1391 = vadd.f32 %v1088, %v1390
    %v1392 = vpop.f32.mrf.mxu0
    %v1393 = vadd.f32 %v1088, %v1392
    %1394 = vmatmul.bf16.gmra.mxu0 %v1202
    %v1395 = vpop.f32.mrf.mxu0
    %v1396 = vadd.f32 %v1088, %v1395
    %v1397 = vpop.f32.mrf.mxu0
    %v1398 = vadd.f32 %v1088, %v1397
    %1399 = vmatmul.bf16.gmra.mxu0 %v1204
    %v1400 = vpop.f32.mrf.mxu0
    %v1401 = vadd.f32 %v1088, %v1400
    %v1402 = vpop.f32.mrf.mxu0
    %v1403 = vadd.f32 %v1088, %v1402
    %1404 = vmatmul.bf16.gmra.mxu0 %v1206
    %v1405 = vpop.f32.mrf.mxu0
    %v1406 = vadd.f32 %v1088, %v1405
    %v1407 = vpop.f32.mrf.mxu0
    %v1408 = vadd.f32 %v1088, %v1407
    %1409 = vmatmul.bf16.gmra.mxu0 %v1208
    %v1410 = vpop.f32.mrf.mxu0
    %v1411 = vadd.f32 %v1088, %v1410
    %v1412 = vpop.f32.mrf.mxu0
    %v1413 = vadd.f32 %v1088, %v1412
    %1414 = vmatmul.bf16.gmra.mxu0 %v1210
    %v1415 = vpop.f32.mrf.mxu0
    %v1416 = vadd.f32 %v1088, %v1415
    %v1417 = vpop.f32.mrf.mxu0
    %v1418 = vadd.f32 %v1088, %v1417
    %1419 = vmatmul.bf16.gmra.mxu0 %v1212
    %v1420 = vpop.f32.mrf.mxu0
    %v1421 = vadd.f32 %v1088, %v1420
    %v1422 = vpop.f32.mrf.mxu0
    %v1423 = vadd.f32 %v1088, %v1422
    %1424 = vmatmul.bf16.gmra.mxu0 %v1214
    %v1425 = vpop.f32.mrf.mxu0
    %v1426 = vadd.f32 %v1088, %v1425
    %v1427 = vpop.f32.mrf.mxu0
    %v1428 = vadd.f32 %v1088, %v1427
    %1429 = vmatmul.bf16.gmra.mxu0 %v1216
    %v1430 = vpop.f32.mrf.mxu0
    %v1431 = vadd.f32 %v1088, %v1430
    %v1432 = vpop.f32.mrf.mxu0
    %v1433 = vadd.f32 %v1088, %v1432
    %1434 = vdwg.mxu0
    %1435 = vmatpush.bf16.msra.mxu0 %v1329
    %1436 = vmatpush.bf16.msra.mxu0 %v1328
    %1437 = vmatpush.bf16.msra.mxu0 %v1327
    %1438 = vmatpush.bf16.msra.mxu0 %v1326
    %1439 = vmatpush.bf16.msra.mxu0 %v1325
    %1440 = vmatpush.bf16.msra.mxu0 %v1324
    %1441 = vmatpush.bf16.msra.mxu0 %v1323
    %1442 = vmatpush.bf16.msra.mxu0 %v1322
    %1443 = vmatmul.bf16.gmra.mxu0 %v1187
    %v1444 = vpop.f32.mrf.mxu0
    %v1445 = vadd.f32 %v1356, %v1444
    %v1446 = vpop.f32.mrf.mxu0
    %v1447 = vadd.f32 %v1358, %v1446
    %1448 = vmatmul.bf16.gmra.mxu0 %v1189
    %v1449 = vpop.f32.mrf.mxu0
    %v1450 = vadd.f32 %v1361, %v1449
    %v1451 = vpop.f32.mrf.mxu0
    %v1452 = vadd.f32 %v1363, %v1451
    %1453 = vmatmul.bf16.gmra.mxu0 %v1191
    %v1454 = vpop.f32.mrf.mxu0
    %v1455 = vadd.f32 %v1366, %v1454
    %v1456 = vpop.f32.mrf.mxu0
    %v1457 = vadd.f32 %v1368, %v1456
    %1458 = vmatmul.bf16.gmra.mxu0 %v1193
    %v1459 = vpop.f32.mrf.mxu0
    %v1460 = vadd.f32 %v1371, %v1459
    %v1461 = vpop.f32.mrf.mxu0
    %v1462 = vadd.f32 %v1373, %v1461
    %1463 = vmatmul.bf16.gmra.mxu0 %v1195
    %v1464 = vpop.f32.mrf.mxu0
    %v1465 = vadd.f32 %v1376, %v1464
    %v1466 = vpop.f32.mrf.mxu0
    %v1467 = vadd.f32 %v1378, %v1466
    %1468 = vmatmul.bf16.gmra.mxu0 %v1197
    %v1469 = vpop.f32.mrf.mxu0
    %v1470 = vadd.f32 %v1381, %v1469
    %v1471 = vpop.f32.mrf.mxu0
    %v1472 = vadd.f32 %v1383, %v1471
    %1473 = vmatmul.bf16.gmra.mxu0 %v1199
    %v1474 = vpop.f32.mrf.mxu0
    %v1475 = vadd.f32 %v1386, %v1474
    %v1476 = vpop.f32.mrf.mxu0
    %v1477 = vadd.f32 %v1388, %v1476
    %1478 = vmatmul.bf16.gmra.mxu0 %v1201
    %v1479 = vpop.f32.mrf.mxu0
    %v1480 = vadd.f32 %v1391, %v1479
    %v1481 = vpop.f32.mrf.mxu0
    %v1482 = vadd.f32 %v1393, %v1481
    %1483 = vmatmul.bf16.gmra.mxu0 %v1203
    %v1484 = vpop.f32.mrf.mxu0
    %v1485 = vadd.f32 %v1396, %v1484
    %v1486 = vpop.f32.mrf.mxu0
    %v1487 = vadd.f32 %v1398, %v1486
    %1488 = vmatmul.bf16.gmra.mxu0 %v1205
    %v1489 = vpop.f32.mrf.mxu0
    %v1490 = vadd.f32 %v1401, %v1489
    %v1491 = vpop.f32.mrf.mxu0
    %v1492 = vadd.f32 %v1403, %v1491
    %1493 = vmatmul.bf16.gmra.mxu0 %v1207
    %v1494 = vpop.f32.mrf.mxu0
    %v1495 = vadd.f32 %v1406, %v1494
    %v1496 = vpop.f32.mrf.mxu0
    %v1497 = vadd.f32 %v1408, %v1496
    %1498 = vmatmul.bf16.gmra.mxu0 %v1209
    %v1499 = vpop.f32.mrf.mxu0
    %v1500 = vadd.f32 %v1411, %v1499
    %v1501 = vpop.f32.mrf.mxu0
    %v1502 = vadd.f32 %v1413, %v1501
    %1503 = vmatmul.bf16.gmra.mxu0 %v1211
    %v1504 = vpop.f32.mrf.mxu0
    %v1505 = vadd.f32 %v1416, %v1504
    %v1506 = vpop.f32.mrf.mxu0
    %v1507 = vadd.f32 %v1418, %v1506
    %1508 = vmatmul.bf16.gmra.mxu0 %v1213
    %v1509 = vpop.f32.mrf.mxu0
    %v1510 = vadd.f32 %v1421, %v1509
    %v1511 = vpop.f32.mrf.mxu0
    %v1512 = vadd.f32 %v1423, %v1511
    %1513 = vmatmul.bf16.gmra.mxu0 %v1215
    %v1514 = vpop.f32.mrf.mxu0
    %v1515 = vadd.f32 %v1426, %v1514
    %v1516 = vpop.f32.mrf.mxu0
    %v1517 = vadd.f32 %v1428, %v1516
    %1518 = vmatmul.bf16.gmra.mxu0 %v1217
    %v1519 = vpop.f32.mrf.mxu0
    %v1520 = vadd.f32 %v1431, %v1519
    %v1521 = vpop.f32.mrf.mxu0
    %v1522 = vadd.f32 %v1433, %v1521
    %1523 = vdwg.mxu0
    %v1524 = vpack.c.bf16 %v1447, %v1445
    %v1525 = vpack.c.bf16 %v1452, %v1450
    %v1526 = vpack.c.bf16 %v1457, %v1455
    %v1527 = vpack.c.bf16 %v1462, %v1460
    %v1528 = vpack.c.bf16 %v1467, %v1465
    %v1529 = vpack.c.bf16 %v1472, %v1470
    %v1530 = vpack.c.bf16 %v1477, %v1475
    %v1531 = vpack.c.bf16 %v1482, %v1480
    %v1532 = vpack.c.bf16 %v1487, %v1485
    %v1533 = vpack.c.bf16 %v1492, %v1490
    %v1534 = vpack.c.bf16 %v1497, %v1495
    %v1535 = vpack.c.bf16 %v1502, %v1500
    %v1536 = vpack.c.bf16 %v1507, %v1505
    %v1537 = vpack.c.bf16 %v1512, %v1510
    %v1538 = vpack.c.bf16 %v1517, %v1515
    %v1539 = vpack.c.bf16 %v1522, %v1520
    %v1540 = vld [vmem:[#allocation11] sm:$0xf]
    %v1541 = vld [vmem:[#allocation11 + $0x4] sm:$0xf]
    %v1542 = vld [vmem:[#allocation11 + $0x8] sm:$0xf]
    %v1543 = vld [vmem:[#allocation11 + $0xc] sm:$0xf]
    %v1544 = vld [vmem:[#allocation11 + $0x10] sm:$0xf]
    %v1545 = vld [vmem:[#allocation11 + $0x14] sm:$0xf]
    %v1546 = vld [vmem:[#allocation11 + $0x18] sm:$0xf]
    %v1547 = vld [vmem:[#allocation11 + $0x1c] sm:$0xf]
    %v1548 = vld [vmem:[#allocation11 + $0x20] sm:$0xf]
    %v1549 = vld [vmem:[#allocation11 + $0x24] sm:$0xf]
    %v1550 = vld [vmem:[#allocation11 + $0x28] sm:$0xf]
    %v1551 = vld [vmem:[#allocation11 + $0x2c] sm:$0xf]
    %v1552 = vld [vmem:[#allocation11 + $0x30] sm:$0xf]
    %v1553 = vld [vmem:[#allocation11 + $0x34] sm:$0xf]
    %v1554 = vld [vmem:[#allocation11 + $0x38] sm:$0xf]
    %v1555 = vld [vmem:[#allocation11 + $0x3c] sm:$0xf]
    %v1556 = vld [vmem:[%s7] sm:$0x1]
    %v1558 = vperm.slane %v1556, 0
    %v1576 = vunpack.c.l.b16 %v1540
    %v1577 = vunpack.c.l.b16 %v1541
    %v1578 = vunpack.c.l.b16 %v1542
    %v1579 = vunpack.c.l.b16 %v1543
    %v1580 = vunpack.c.l.b16 %v1544
    %v1581 = vunpack.c.l.b16 %v1545
    %v1582 = vunpack.c.l.b16 %v1546
    %v1583 = vunpack.c.l.b16 %v1547
    %v1584 = vunpack.c.l.b16 %v1548
    %v1585 = vunpack.c.l.b16 %v1549
    %v1586 = vunpack.c.l.b16 %v1550
    %v1587 = vunpack.c.l.b16 %v1551
    %v1588 = vunpack.c.l.b16 %v1552
    %v1589 = vunpack.c.l.b16 %v1553
    %v1590 = vunpack.c.l.b16 %v1554
    %v1591 = vunpack.c.l.b16 %v1555
    %v1592 = vpack.c.b16 %v1577, %v1576
    %v1593 = vpack.c.b16 %v1579, %v1578
    %v1594 = vpack.c.b16 %v1581, %v1580
    %v1595 = vpack.c.b16 %v1583, %v1582
    %v1596 = vpack.c.b16 %v1585, %v1584
    %v1597 = vpack.c.b16 %v1587, %v1586
    %v1598 = vpack.c.b16 %v1589, %v1588
    %v1599 = vpack.c.b16 %v1591, %v1590
    %1608 = vmatpush.bf16.msra.mxu0 %v1599
    %1609 = vmatpush.bf16.msra.mxu0 %v1598
    %1610 = vmatpush.bf16.msra.mxu0 %v1597
    %1611 = vmatpush.bf16.msra.mxu0 %v1596
    %1612 = vmatpush.bf16.msra.mxu0 %v1595
    %1613 = vmatpush.bf16.msra.mxu0 %v1594
    %1614 = vmatpush.bf16.msra.mxu0 %v1593
    %1615 = vmatpush.bf16.msra.mxu0 %v1592
    %1616 = vmatmul.bf16.gmra.mxu0 %v1524
    %v1617 = vpop.f32.mrf.mxu0
    %v1618 = vadd.f32 %v1558, %v1617
    %v1619 = vpop.f32.mrf.mxu0
    %v1620 = vadd.f32 %v1558, %v1619
    %1621 = vmatmul.bf16.gmra.mxu0 %v1525
    %v1622 = vpop.f32.mrf.mxu0
    %v1623 = vadd.f32 %v1558, %v1622
    %v1624 = vpop.f32.mrf.mxu0
    %v1625 = vadd.f32 %v1558, %v1624
    %1626 = vmatmul.bf16.gmra.mxu0 %v1526
    %v1627 = vpop.f32.mrf.mxu0
    %v1628 = vadd.f32 %v1558, %v1627
    %v1629 = vpop.f32.mrf.mxu0
    %v1630 = vadd.f32 %v1558, %v1629
    %1631 = vmatmul.bf16.gmra.mxu0 %v1527
    %v1632 = vpop.f32.mrf.mxu0
    %v1633 = vadd.f32 %v1558, %v1632
    %v1634 = vpop.f32.mrf.mxu0
    %v1635 = vadd.f32 %v1558, %v1634
    %1636 = vmatmul.bf16.gmra.mxu0 %v1528
    %v1637 = vpop.f32.mrf.mxu0
    %v1638 = vadd.f32 %v1558, %v1637
    %v1639 = vpop.f32.mrf.mxu0
    %v1640 = vadd.f32 %v1558, %v1639
    %1641 = vmatmul.bf16.gmra.mxu0 %v1529
    %v1642 = vpop.f32.mrf.mxu0
    %v1643 = vadd.f32 %v1558, %v1642
    %v1644 = vpop.f32.mrf.mxu0
    %v1645 = vadd.f32 %v1558, %v1644
    %1646 = vmatmul.bf16.gmra.mxu0 %v1530
    %v1647 = vpop.f32.mrf.mxu0
    %v1648 = vadd.f32 %v1558, %v1647
    %v1649 = vpop.f32.mrf.mxu0
    %v1650 = vadd.f32 %v1558, %v1649
    %1651 = vmatmul.bf16.gmra.mxu0 %v1531
    %v1652 = vpop.f32.mrf.mxu0
    %v1653 = vadd.f32 %v1558, %v1652
    %v1654 = vpop.f32.mrf.mxu0
    %v1655 = vadd.f32 %v1558, %v1654
    %1656 = vmatmul.bf16.gmra.mxu0 %v1532
    %v1657 = vpop.f32.mrf.mxu0
    %v1658 = vadd.f32 %v1558, %v1657
    %v1659 = vpop.f32.mrf.mxu0
    %v1660 = vadd.f32 %v1558, %v1659
    %1661 = vmatmul.bf16.gmra.mxu0 %v1533
    %v1662 = vpop.f32.mrf.mxu0
    %v1663 = vadd.f32 %v1558, %v1662
    %v1664 = vpop.f32.mrf.mxu0
    %v1665 = vadd.f32 %v1558, %v1664
    %1666 = vmatmul.bf16.gmra.mxu0 %v1534
    %v1667 = vpop.f32.mrf.mxu0
    %v1668 = vadd.f32 %v1558, %v1667
    %v1669 = vpop.f32.mrf.mxu0
    %v1670 = vadd.f32 %v1558, %v1669
    %1671 = vmatmul.bf16.gmra.mxu0 %v1535
    %v1672 = vpop.f32.mrf.mxu0
    %v1673 = vadd.f32 %v1558, %v1672
    %v1674 = vpop.f32.mrf.mxu0
    %v1675 = vadd.f32 %v1558, %v1674
    %1676 = vmatmul.bf16.gmra.mxu0 %v1536
    %v1677 = vpop.f32.mrf.mxu0
    %v1678 = vadd.f32 %v1558, %v1677
    %v1679 = vpop.f32.mrf.mxu0
    %v1680 = vadd.f32 %v1558, %v1679
    %1681 = vmatmul.bf16.gmra.mxu0 %v1537
    %v1682 = vpop.f32.mrf.mxu0
    %v1683 = vadd.f32 %v1558, %v1682
    %v1684 = vpop.f32.mrf.mxu0
    %v1685 = vadd.f32 %v1558, %v1684
    %1686 = vmatmul.bf16.gmra.mxu0 %v1538
    %v1687 = vpop.f32.mrf.mxu0
    %v1688 = vadd.f32 %v1558, %v1687
    %v1689 = vpop.f32.mrf.mxu0
    %v1690 = vadd.f32 %v1558, %v1689
    %1691 = vmatmul.bf16.gmra.mxu0 %v1539
    %v1692 = vpop.f32.mrf.mxu0
    %v1693 = vadd.f32 %v1558, %v1692
    %v1694 = vpop.f32.mrf.mxu0
    %v1695 = vadd.f32 %v1558, %v1694
    %1696 = vdwg.mxu0
    %vm1697 = vcmp.gt.f32.partialorder %v1618, 0.0
    %vm1698 = vcmp.gt.f32.partialorder %v1620, 0.0
    %vm1699 = vcmp.gt.f32.partialorder %v1623, 0.0
    %vm1700 = vcmp.gt.f32.partialorder %v1625, 0.0
    %vm1701 = vcmp.gt.f32.partialorder %v1628, 0.0
    %vm1702 = vcmp.gt.f32.partialorder %v1630, 0.0
    %vm1703 = vcmp.gt.f32.partialorder %v1633, 0.0
    %vm1704 = vcmp.gt.f32.partialorder %v1635, 0.0
    %vm1705 = vcmp.gt.f32.partialorder %v1638, 0.0
    %vm1706 = vcmp.gt.f32.partialorder %v1640, 0.0
    %vm1707 = vcmp.gt.f32.partialorder %v1643, 0.0
    %vm1708 = vcmp.gt.f32.partialorder %v1645, 0.0
    %vm1709 = vcmp.gt.f32.partialorder %v1648, 0.0
    %vm1710 = vcmp.gt.f32.partialorder %v1650, 0.0
    %vm1711 = vcmp.gt.f32.partialorder %v1653, 0.0
    %vm1712 = vcmp.gt.f32.partialorder %v1655, 0.0
    %vm1713 = vcmp.gt.f32.partialorder %v1658, 0.0
    %vm1714 = vcmp.gt.f32.partialorder %v1660, 0.0
    %vm1715 = vcmp.gt.f32.partialorder %v1663, 0.0
    %vm1716 = vcmp.gt.f32.partialorder %v1665, 0.0
    %vm1717 = vcmp.gt.f32.partialorder %v1668, 0.0
    %vm1718 = vcmp.gt.f32.partialorder %v1670, 0.0
    %vm1719 = vcmp.gt.f32.partialorder %v1673, 0.0
    %vm1720 = vcmp.gt.f32.partialorder %v1675, 0.0
    %vm1721 = vcmp.gt.f32.partialorder %v1678, 0.0
    %vm1722 = vcmp.gt.f32.partialorder %v1680, 0.0
    %vm1723 = vcmp.gt.f32.partialorder %v1683, 0.0
    %vm1724 = vcmp.gt.f32.partialorder %v1685, 0.0
    %vm1725 = vcmp.gt.f32.partialorder %v1688, 0.0
    %vm1726 = vcmp.gt.f32.partialorder %v1690, 0.0
    %vm1727 = vcmp.gt.f32.partialorder %v1693, 0.0
    %vm1728 = vcmp.gt.f32.partialorder %v1695, 0.0
    %v1729 = vmul.f32 %v1618, 0.01
    %v1730 = vmul.f32 %v1620, 0.01
    %v1731 = vmul.f32 %v1623, 0.01
    %v1732 = vmul.f32 %v1625, 0.01
    %v1733 = vmul.f32 %v1628, 0.01
    %v1734 = vmul.f32 %v1630, 0.01
    %v1735 = vmul.f32 %v1633, 0.01
    %v1736 = vmul.f32 %v1635, 0.01
    %v1737 = vmul.f32 %v1638, 0.01
    %v1738 = vmul.f32 %v1640, 0.01
    %v1739 = vmul.f32 %v1643, 0.01
    %v1740 = vmul.f32 %v1645, 0.01
    %v1741 = vmul.f32 %v1648, 0.01
    %v1742 = vmul.f32 %v1650, 0.01
    %v1743 = vmul.f32 %v1653, 0.01
    %v1744 = vmul.f32 %v1655, 0.01
    %v1745 = vmul.f32 %v1658, 0.01
    %v1746 = vmul.f32 %v1660, 0.01
    %v1747 = vmul.f32 %v1663, 0.01
    %v1748 = vmul.f32 %v1665, 0.01
    %v1749 = vmul.f32 %v1668, 0.01
    %v1750 = vmul.f32 %v1670, 0.01
    %v1751 = vmul.f32 %v1673, 0.01
    %v1752 = vmul.f32 %v1675, 0.01
    %v1753 = vmul.f32 %v1678, 0.01
    %v1754 = vmul.f32 %v1680, 0.01
    %v1755 = vmul.f32 %v1683, 0.01
    %v1756 = vmul.f32 %v1685, 0.01
    %v1757 = vmul.f32 %v1688, 0.01
    %v1758 = vmul.f32 %v1690, 0.01
    %v1759 = vmul.f32 %v1693, 0.01
    %v1760 = vmul.f32 %v1695, 0.01
    %v1761 = vsel %vm1697, %v1618, %v1729
    %v1762 = vsel %vm1698, %v1620, %v1730
    %v1763 = vsel %vm1699, %v1623, %v1731
    %v1764 = vsel %vm1700, %v1625, %v1732
    %v1765 = vsel %vm1701, %v1628, %v1733
    %v1766 = vsel %vm1702, %v1630, %v1734
    %v1767 = vsel %vm1703, %v1633, %v1735
    %v1768 = vsel %vm1704, %v1635, %v1736
    %v1769 = vsel %vm1705, %v1638, %v1737
    %v1770 = vsel %vm1706, %v1640, %v1738
    %v1771 = vsel %vm1707, %v1643, %v1739
    %v1772 = vsel %vm1708, %v1645, %v1740
    %v1773 = vsel %vm1709, %v1648, %v1741
    %v1774 = vsel %vm1710, %v1650, %v1742
    %v1775 = vsel %vm1711, %v1653, %v1743
    %v1776 = vsel %vm1712, %v1655, %v1744
    %v1777 = vsel %vm1713, %v1658, %v1745
    %v1778 = vsel %vm1714, %v1660, %v1746
    %v1779 = vsel %vm1715, %v1663, %v1747
    %v1780 = vsel %vm1716, %v1665, %v1748
    %v1781 = vsel %vm1717, %v1668, %v1749
    %v1782 = vsel %vm1718, %v1670, %v1750
    %v1783 = vsel %vm1719, %v1673, %v1751
    %v1784 = vsel %vm1720, %v1675, %v1752
    %v1785 = vsel %vm1721, %v1678, %v1753
    %v1786 = vsel %vm1722, %v1680, %v1754
    %v1787 = vsel %vm1723, %v1683, %v1755
    %v1788 = vsel %vm1724, %v1685, %v1756
    %v1789 = vsel %vm1725, %v1688, %v1757
    %v1790 = vsel %vm1726, %v1690, %v1758
    %v1791 = vsel %vm1727, %v1693, %v1759
    %v1792 = vsel %vm1728, %v1695, %v1760
    %1793 = vst [vmem:[#allocation12] sm:$0xff] %v1761
    %1794 = vst [vmem:[#allocation12 + $0x8] sm:$0xff] %v1762
    %1795 = vst [vmem:[#allocation12 + $0x10] sm:$0xff] %v1763
    %1796 = vst [vmem:[#allocation12 + $0x18] sm:$0xff] %v1764
    %1797 = vst [vmem:[#allocation12 + $0x20] sm:$0xff] %v1765
    %1798 = vst [vmem:[#allocation12 + $0x28] sm:$0xff] %v1766
    %1799 = vst [vmem:[#allocation12 + $0x30] sm:$0xff] %v1767
    %1800 = vst [vmem:[#allocation12 + $0x38] sm:$0xff] %v1768
    %1801 = vst [vmem:[#allocation12 + $0x40] sm:$0xff] %v1769
    %1802 = vst [vmem:[#allocation12 + $0x48] sm:$0xff] %v1770
    %1803 = vst [vmem:[#allocation12 + $0x50] sm:$0xff] %v1771
    %1804 = vst [vmem:[#allocation12 + $0x58] sm:$0xff] %v1772
    %1805 = vst [vmem:[#allocation12 + $0x60] sm:$0xff] %v1773
    %1806 = vst [vmem:[#allocation12 + $0x68] sm:$0xff] %v1774
    %1807 = vst [vmem:[#allocation12 + $0x70] sm:$0xff] %v1775
    %1808 = vst [vmem:[#allocation12 + $0x78] sm:$0xff] %v1776
    %1809 = vst [vmem:[#allocation12 + $0x80] sm:$0xff] %v1777
    %1810 = vst [vmem:[#allocation12 + $0x88] sm:$0xff] %v1778
    %1811 = vst [vmem:[#allocation12 + $0x90] sm:$0xff] %v1779
    %1812 = vst [vmem:[#allocation12 + $0x98] sm:$0xff] %v1780
    %1813 = vst [vmem:[#allocation12 + $0xa0] sm:$0xff] %v1781
    %1814 = vst [vmem:[#allocation12 + $0xa8] sm:$0xff] %v1782
    %1815 = vst [vmem:[#allocation12 + $0xb0] sm:$0xff] %v1783
    %1816 = vst [vmem:[#allocation12 + $0xb8] sm:$0xff] %v1784
    %1817 = vst [vmem:[#allocation12 + $0xc0] sm:$0xff] %v1785
    %1818 = vst [vmem:[#allocation12 + $0xc8] sm:$0xff] %v1786
    %1819 = vst [vmem:[#allocation12 + $0xd0] sm:$0xff] %v1787
    %1820 = vst [vmem:[#allocation12 + $0xd8] sm:$0xff] %v1788
    %1821 = vst [vmem:[#allocation12 + $0xe0] sm:$0xff] %v1789
    %1822 = vst [vmem:[#allocation12 + $0xe8] sm:$0xff] %v1790
    %1823 = vst [vmem:[#allocation12 + $0xf0] sm:$0xff] %v1791
    %1824 = vst [vmem:[#allocation12 + $0xf8] sm:$0xff] %v1792
    // Predicated region
    $region58: #{tpu_custom_call.1} parent=1 // pred_check
      _
    $region59: #{tpu_custom_call.1} parent=1 // pred_check_branch
      %1826 = sbr.rel (0) target = $region61
    $region60: #{tpu_custom_call.1} parent=1 // pred_region
      %1828 = vsyncadd [#allocation5], 0
      %s1829 = sshll.u32 [#allocation12], 4
      %s1830 = int_to_ptr.vmem [resolvable:$true] %s1829
      %s1831 = sshll.u32 %s8, 4
      %s1832 = int_to_ptr.hbm [resolvable:$true] %s1831
      %1837 = dma.vmem_to_hbm [thread:$0]  %s1830, 4096, %s1832, [#allocation5], 128, 128, 8
    $region61: #{tpu_custom_call.1} parent=1 // pred_fallthru
      _
    // Predicated region
    $region62: #{tpu_custom_call.1} parent=1 // pred_check
      _
    $region63: #{tpu_custom_call.1} parent=1 // pred_check_branch
      %1839 = sbr.rel (0) target = $region65
    $region64: #{tpu_custom_call.1} parent=1 // pred_region
      %1841 = dma.done [#allocation5], 4096
    $region65: #{tpu_custom_call.1} parent=1 // pred_fallthru
      _
    %1842 = vsyncpa [#allocation4], 1
    %1843 = vsyncpa [#allocation7], 1
    %1844 = vsyncpa [#allocation10], 1
    %1845 = vsyncpa [#allocation5], 1

</llo_original>
